<compile_context>
chip_gen: v7x
topology: tpu7x:2x2x1
jax: 0.10.0
libtpu: 0.0.40
codegen_flags: <defaults>
</compile_context>

<pallas_src>
import functools

import jax
import jax.numpy as jnp
from jax.experimental import pallas as pl
from jax.experimental.pallas import tpu as pltpu

_LANE = 128
_SUB = 8
_TARGET_BLOCK_BYTES = 2 * 1024 * 1024  # ~2 MiB blocks: safe on v5e/v6e/v7x


def _siren_kernel(x_ref, o_ref, *, w0: float):
    # Upcast to f32 for the multiply + sin (free for f32 inputs, keeps bf16
    # accuracy and avoids bf16 VPU/EUP gaps on v5e), cast back on store.
    x = x_ref[...].astype(jnp.float32)
    o_ref[...] = jnp.sin(w0 * x).astype(o_ref.dtype)


def siren_forward(x: jax.Array, w0: float = 1.0) -> jax.Array:
    """Computes sin(w0 * x) elementwise, matching torch.sin(w0 * x)."""
    orig_shape = x.shape
    dtype = x.dtype
    n = x.size
    if n == 0:
        return jnp.sin(w0 * x)

    # TODO(synk): float(w0) requires a trace-time constant; a traced/learned w0
    # would need an SMEM scalar operand instead.
    w0 = float(w0)

    # Collapse leading dims only (layout-preserving). 0-D/1-D become (1, n).
    if x.ndim >= 2:
        D = orig_shape[-1]
        rows = n // D
    else:
        D = n
        rows = 1
    x2d = x.reshape(rows, D)

    itemsize = jnp.dtype(dtype).itemsize
    # Physical layout pads the last dim to 128 lanes; size blocks on that.
    d_pad = max(_LANE, pl.cdiv(D, _LANE) * _LANE)

    # Lane-dim block: take full D unless even 8 rows of it blow the budget
    # (then chop into 128-multiples; ragged tail is masked by Pallas).
    if D <= _LANE or d_pad * itemsize * _SUB <= _TARGET_BLOCK_BYTES:
        tl = D
        tl_pad = d_pad
    else:
        tl = max(_LANE, ((_TARGET_BLOCK_BYTES // (_SUB * itemsize)) // _LANE) * _LANE)
        tl = min(tl, (D // _LANE) * _LANE) if D >= _LANE else D
        tl_pad = tl

    # Row-dim block: fill the remaining budget, multiple of 8 (or full extent).
    tr = max(1, _TARGET_BLOCK_BYTES // (tl_pad * itemsize))
    if tr >= rows:
        tr = rows  # full extent: (8,128) rule satisfied even if not %8
    else:
        tr = max(_SUB, (tr // _SUB) * _SUB)

    grid = (pl.cdiv(rows, tr), pl.cdiv(D, tl))

    kernel = functools.partial(_siren_kernel, w0=w0)

    out2d = pl.pallas_call(
        kernel,
        out_shape=jax.ShapeDtypeStruct((rows, D), dtype),
        grid_spec=pltpu.PrefetchScalarGridSpec(
            num_scalar_prefetch=0,
            grid=grid,
            in_specs=[pl.BlockSpec((tr, tl), lambda i, j: (i, j))],
            out_specs=pl.BlockSpec((tr, tl), lambda i, j: (i, j)),
        ),
        compiler_params=pltpu.CompilerParams(
            dimension_semantics=("parallel", "parallel"),
        ),
    )(x2d)

    return out2d.reshape(orig_shape)


if __name__ == "__main__":
    key = jax.random.PRNGKey(0)

    # NCHW input, small shapes: batch=2, channels=4, spatial=16x16
    x = jax.random.normal(key, (2, 4, 16, 16), dtype=jnp.float32)
    w0 = 30.0  # typical SIREN frequency; module default is 1.0 but parameterized

    y = siren_forward(x, w0=w0)
    y = jax.block_until_ready(y)

    y_ref = jnp.sin(w0 * x)
    assert y.shape == x.shape and y.dtype == x.dtype
    assert jnp.allclose(y, y_ref, atol=1e-5, rtol=1e-5)

    # Extra check: unaligned trailing dim / odd rank (exercises the no-pad,
    # no-relayout path with full-extent blocks).
    x2 = jax.random.normal(jax.random.PRNGKey(1), (3, 50, 7), dtype=jnp.float32)
    y2 = jax.block_until_ready(siren_forward(x2, w0=1.0))
    assert jnp.allclose(y2, jnp.sin(1.0 * x2), atol=1e-5, rtol=1e-5)

    print("KERNEL_OK")
</pallas_src>

<mosaic_0001>
module attributes {stable_mosaic.version = 11 : i64} {
  func.func @_siren_kernel(%arg0: i32, %arg1: i32, %arg2: memref<128x16xf32, #tpu.memory_space<vmem>>, %arg3: memref<128x16xf32, #tpu.memory_space<vmem>>) attributes {dimension_semantics = [#tpu.dimension_semantics<parallel>, #tpu.dimension_semantics<parallel>], iteration_bounds = array<i64: 1, 1>, scalar_prefetch = 0 : i64, scratch_operands = 0 : i64, tpu.core_type = #tpu.core_type<tc>, window_params = [{transform_indices = @transform_0, window_bounds = array<i64: 128, 16>}, {transform_indices = @transform_1, window_bounds = array<i64: 128, 16>}]} {
    %c0 = arith.constant 0 : index
    %c0_0 = arith.constant 0 : index
    %0 = vector.load %arg2[%c0, %c0_0] : memref<128x16xf32, #tpu.memory_space<vmem>>, vector<128x16xf32>
    %cst = arith.constant 3.000000e+01 : f32
    %1 = vector.broadcast %cst : f32 to vector<128x16xf32>
    %2 = arith.mulf %1, %0 : vector<128x16xf32>
    %3 = math.sin %2 : vector<128x16xf32>
    %c0_1 = arith.constant 0 : index
    %c0_2 = arith.constant 0 : index
    %4 = vector.load %arg3[%c0_1, %c0_2] : memref<128x16xf32, #tpu.memory_space<vmem>>, vector<128x16xf32>
    tpu.vector_store %arg3[%c0_1, %c0_2], %3 {strides = array<i32>} : memref<128x16xf32, #tpu.memory_space<vmem>>, vector<128x16xf32>,
    return
  }
  func.func @transform_0(%arg0: i32, %arg1: i32) -> (i32, i32) {
    %c0_i32 = arith.constant 0 : i32
    return %arg0, %arg1 : i32, i32
  }
  func.func @transform_1(%arg0: i32, %arg1: i32) -> (i32, i32) {
    %c0_i32 = arith.constant 0 : i32
    return %arg0, %arg1 : i32, i32
  }
}

</mosaic_0001>

<llo_original>
// kernel: tpu_custom_call.1
$region0: #{tpu_custom_call.1}
  #allocation0 [shape = 'u32[]', space=smem, size = 0x4, offset = 0x4, fixed_abs, tag = 'smem constant byte address 0x4 - core index']
  #allocation1 [shape = 'u32[144,128]{1,0:T(1,128)}', space=vmem, size = 0x12000, scoped, tag = 'internal scratch']
  %s0 = inlined_call_operand.vmem [shape: f32[128,16], index: 0, kind: input, shape index: {}]
  %s1 = inlined_call_operand.vmem [shape: f32[128,16], index: 1, kind: output, shape index: {}]
  %s2 = sld [smem:[#allocation0]]
  $region14: #{tpu_custom_call.1} parent=0
    _
  %s4 = ssub.s32 1, %s2
  %s5 = scalar_select 0, %s4, %s2
  // Predicated region
  $region2: #{tpu_custom_call.1} parent=0 // pred_check
    _
  $region3: #{tpu_custom_call.1} parent=0 // pred_check_branch
    %7 = sbr.rel (0) target = $region5
  $region4: #{tpu_custom_call.1} parent=0 // pred_region
    _
  $region5: #{tpu_custom_call.1} parent=0 // pred_fallthru
    _
  %v8 = vld [vmem:[%s0] sm:$0xff]
  %v9 = vld [vmem:[%s0 + $0x8] sm:$0xff]
  %v10 = vld [vmem:[%s0 + $0x10] sm:$0xff]
  %v11 = vld [vmem:[%s0 + $0x18] sm:$0xff]
  %v12 = vld [vmem:[%s0 + $0x20] sm:$0xff]
  %v13 = vld [vmem:[%s0 + $0x28] sm:$0xff]
  %v14 = vld [vmem:[%s0 + $0x30] sm:$0xff]
  %v15 = vld [vmem:[%s0 + $0x38] sm:$0xff]
  %v16 = vld [vmem:[%s0 + $0x40] sm:$0xff]
  %v17 = vld [vmem:[%s0 + $0x48] sm:$0xff]
  %v18 = vld [vmem:[%s0 + $0x50] sm:$0xff]
  %v19 = vld [vmem:[%s0 + $0x58] sm:$0xff]
  %v20 = vld [vmem:[%s0 + $0x60] sm:$0xff]
  %v21 = vld [vmem:[%s0 + $0x68] sm:$0xff]
  %v22 = vld [vmem:[%s0 + $0x70] sm:$0xff]
  %v23 = vld [vmem:[%s0 + $0x78] sm:$0xff]
  %v24 = vmul.f32 %v8, 30.0
  %v25 = vmul.f32 %v9, 30.0
  %v26 = vmul.f32 %v10, 30.0
  %v27 = vmul.f32 %v11, 30.0
  %v28 = vmul.f32 %v12, 30.0
  %v29 = vmul.f32 %v13, 30.0
  %v30 = vmul.f32 %v14, 30.0
  %v31 = vmul.f32 %v15, 30.0
  %v32 = vmul.f32 %v16, 30.0
  %v33 = vmul.f32 %v17, 30.0
  %v34 = vmul.f32 %v18, 30.0
  %v35 = vmul.f32 %v19, 30.0
  %v36 = vmul.f32 %v20, 30.0
  %v37 = vmul.f32 %v21, 30.0
  %v38 = vmul.f32 %v22, 30.0
  %v39 = vmul.f32 %v23, 30.0
  %v40 = vand.u32 2147483647, %v24
  %vm41 = vcmp.le.f32.partialorder %v40, 0.7853982
  %vm42 = vcmp.lt.s32.totalorder %v24, 0
  %v43 = vand.u32 %v24, 2139095040
  %v44 = vshrl.u32 %v43, 23
  %v45 = vsub.s32 %v44, 127
  %v46 = vand.u32 2147483647, %v24
  %v47 = vand.u32 %v46, 8388607
  %v48 = vor.u32 %v47, 8388608
  %v49 = vsub.s32 0, %v48
  %v50 = vadd.s32 %v45, 1
  %vm51 = vcmp.gt.s32.totalorder %v50, 0
  %v52 = vsel %vm51, %v50, 0
  %v53 = vshrl.u32 %v52, 5
  %v54 = vand.u32 %v52, 31
  %v55 = vsub.s32 32, %v54
  %v56 = vshrl.u32 683565275, %v55
  %v57 = vshll.u32 683565275, %v54
  %v58 = vshrl.u32 2475754826, %v55
  %v59 = vor.u32 %v57, %v58
  %v60 = vshll.u32 2475754826, %v54
  %v61 = vshrl.u32 2131351028, %v55
  %v62 = vor.u32 %v60, %v61
  %v63 = vshll.u32 2131351028, %v54
  %v64 = vshrl.u32 2102212464, %v55
  %v65 = vor.u32 %v63, %v64
  %v66 = vshll.u32 2102212464, %v54
  %v67 = vshrl.u32 920167782, %v55
  %v68 = vor.u32 %v66, %v67
  %v69 = vshll.u32 920167782, %v54
  %v70 = vshrl.u32 1326507024, %v55
  %v71 = vor.u32 %v69, %v70
  %vm72 = vcmp.lt.s32.totalorder %v53, 1
  %vm73 = vcmp.lt.s32.totalorder %v53, 2
  %vm74 = vcmp.lt.s32.totalorder %v53, 3
  %vm75 = vcmp.lt.s32.totalorder %v53, 4
  %v76 = vsel %vm72, %v56, %v59
  %v77 = vsel %vm75, %v65, 2102212464
  %v78 = vsel %vm74, %v62, %v77
  %v79 = vsel %vm73, %v76, %v78
  %v80 = vsel %vm72, %v59, %v62
  %v81 = vsel %vm75, %v68, 920167782
  %v82 = vsel %vm74, %v65, %v81
  %v83 = vsel %vm73, %v80, %v82
  %v84 = vsel %vm72, %v62, %v65
  %v85 = vsel %vm75, %v71, 1326507024
  %v86 = vsel %vm74, %v68, %v85
  %v87 = vsel %vm73, %v84, %v86
  %v88 = vshll.u32 %v48, 8
  %v89 = vmul.u32.u64.compose %v88, %v87
  %v90 = vextract.low.u32 %v89
  %v91 = vextract.high.u32 %v89
  %v92 = vmul.u32.u64.compose %v88, %v83
  %v93 = vextract.low.u32 %v92
  %v94 = vextract.high.u32 %v92
  %v95 = vmul.u32 %v88, %v79
  %v96 = vadd.s32 %v91, %v93
  %vm97 = vc.u32 %v91, %v93
  %v98 = vadd.s32 %v94, 1
  %v99 = vsel %vm97, %v98, %v94
  %v100 = vadd.s32 %v95, %v99
  %v101 = vadd.s32 %v100, 536870912
  %v102 = vshrl.u32 %v101, 30
  %v103 = vshll.u32 %v102, 30
  %v104 = vsub.s32 %v100, %v103
  %vm105 = vcmp.lt.s32.totalorder %v104, 0
  %v106 = vsub.s32 0, %v104
  %v107 = vsel %vm105, %v106, %v104
  %v108 = vclz %v107
  %v109 = vsub.s32 %v108, 2
  %vm110 = vcmp.gt.s32.totalorder 0, %v109
  %v111 = vsel %vm110, 0, %v109
  %v112 = vsub.s32 32, %v111
  %v113 = vshll.u32 %v104, %v111
  %v114 = vshrl.u32 %v96, %v112
  %v115 = vor.u32 %v113, %v114
  %v116 = vsub.s32 4294967266, %v111
  %v117 = vadd.s32 %v116, 127
  %v118 = vshll.u32 %v117, 23
  %v119 = vor.u32 4788187, %v118
  %v120 = vand.u32 2147483647, %v119
  %v122 = vcvt.s32.f32 %v115
  %v123 = vmul.f32 %v122, %v120
  %v124 = vxor.u32 %v123, 2147483648
  %v125 = vsel %vm42, %v124, %v123
  %v126 = vsub.s32 4, %v102
  %v127 = vsel %vm42, %v126, %v102
  %v128 = vsel %vm41, %v24, %v125
  %v129 = vsel %vm41, 0, %v127
  %v130 = vcosq.f32.pop %v128
  %v131 = vsinq.f32.pop %v128
  %vm132 = vweird.f32 %v24
  %v133 = vadd.s32 %v129, 3
  %v134 = vand.u32 %v133, 3
  %vm135 = vcmp.lt.s32.totalorder %v134, 2
  %vm136 = vcmp.eq.s32.totalorder %v134, 0
  %v137 = vxor.u32 %v131, 2147483648
  %v138 = vsel %vm136, %v130, %v137
  %vm139 = vcmp.eq.s32.totalorder %v134, 2
  %v140 = vxor.u32 %v130, 2147483648
  %v141 = vsel %vm139, %v140, %v131
  %v142 = vsel %vm135, %v138, %v141
  %v143 = vsel %vm132, nan, %v142
  %v144 = vand.u32 2147483647, %v25
  %vm145 = vcmp.le.f32.partialorder %v144, 0.7853982
  %vm146 = vcmp.lt.s32.totalorder %v25, 0
  %v147 = vand.u32 %v25, 2139095040
  %v148 = vshrl.u32 %v147, 23
  %v149 = vsub.s32 %v148, 127
  %v150 = vand.u32 2147483647, %v25
  %v151 = vand.u32 %v150, 8388607
  %v152 = vor.u32 %v151, 8388608
  %v153 = vsub.s32 0, %v152
  %v154 = vadd.s32 %v149, 1
  %vm155 = vcmp.gt.s32.totalorder %v154, 0
  %v156 = vsel %vm155, %v154, 0
  %v157 = vshrl.u32 %v156, 5
  %v158 = vand.u32 %v156, 31
  %v159 = vsub.s32 32, %v158
  %v160 = vshrl.u32 683565275, %v159
  %v161 = vshll.u32 683565275, %v158
  %v162 = vshrl.u32 2475754826, %v159
  %v163 = vor.u32 %v161, %v162
  %v164 = vshll.u32 2475754826, %v158
  %v165 = vshrl.u32 2131351028, %v159
  %v166 = vor.u32 %v164, %v165
  %v167 = vshll.u32 2131351028, %v158
  %v168 = vshrl.u32 2102212464, %v159
  %v169 = vor.u32 %v167, %v168
  %v170 = vshll.u32 2102212464, %v158
  %v171 = vshrl.u32 920167782, %v159
  %v172 = vor.u32 %v170, %v171
  %v173 = vshll.u32 920167782, %v158
  %v174 = vshrl.u32 1326507024, %v159
  %v175 = vor.u32 %v173, %v174
  %vm176 = vcmp.lt.s32.totalorder %v157, 1
  %vm177 = vcmp.lt.s32.totalorder %v157, 2
  %vm178 = vcmp.lt.s32.totalorder %v157, 3
  %vm179 = vcmp.lt.s32.totalorder %v157, 4
  %v180 = vsel %vm176, %v160, %v163
  %v181 = vsel %vm179, %v169, 2102212464
  %v182 = vsel %vm178, %v166, %v181
  %v183 = vsel %vm177, %v180, %v182
  %v184 = vsel %vm176, %v163, %v166
  %v185 = vsel %vm179, %v172, 920167782
  %v186 = vsel %vm178, %v169, %v185
  %v187 = vsel %vm177, %v184, %v186
  %v188 = vsel %vm176, %v166, %v169
  %v189 = vsel %vm179, %v175, 1326507024
  %v190 = vsel %vm178, %v172, %v189
  %v191 = vsel %vm177, %v188, %v190
  %v192 = vshll.u32 %v152, 8
  %v193 = vmul.u32.u64.compose %v192, %v191
  %v194 = vextract.low.u32 %v193
  %v195 = vextract.high.u32 %v193
  %v196 = vmul.u32.u64.compose %v192, %v187
  %v197 = vextract.low.u32 %v196
  %v198 = vextract.high.u32 %v196
  %v199 = vmul.u32 %v192, %v183
  %v200 = vadd.s32 %v195, %v197
  %vm201 = vc.u32 %v195, %v197
  %v202 = vadd.s32 %v198, 1
  %v203 = vsel %vm201, %v202, %v198
  %v204 = vadd.s32 %v199, %v203
  %v205 = vadd.s32 %v204, 536870912
  %v206 = vshrl.u32 %v205, 30
  %v207 = vshll.u32 %v206, 30
  %v208 = vsub.s32 %v204, %v207
  %vm209 = vcmp.lt.s32.totalorder %v208, 0
  %v210 = vsub.s32 0, %v208
  %v211 = vsel %vm209, %v210, %v208
  %v212 = vclz %v211
  %v213 = vsub.s32 %v212, 2
  %vm214 = vcmp.gt.s32.totalorder 0, %v213
  %v215 = vsel %vm214, 0, %v213
  %v216 = vsub.s32 32, %v215
  %v217 = vshll.u32 %v208, %v215
  %v218 = vshrl.u32 %v200, %v216
  %v219 = vor.u32 %v217, %v218
  %v220 = vsub.s32 4294967266, %v215
  %v221 = vadd.s32 %v220, 127
  %v222 = vshll.u32 %v221, 23
  %v223 = vor.u32 4788187, %v222
  %v224 = vand.u32 2147483647, %v223
  %v226 = vcvt.s32.f32 %v219
  %v227 = vmul.f32 %v226, %v224
  %v228 = vxor.u32 %v227, 2147483648
  %v229 = vsel %vm146, %v228, %v227
  %v230 = vsub.s32 4, %v206
  %v231 = vsel %vm146, %v230, %v206
  %v232 = vsel %vm145, %v25, %v229
  %v233 = vsel %vm145, 0, %v231
  %v234 = vcosq.f32.pop %v232
  %v235 = vsinq.f32.pop %v232
  %vm236 = vweird.f32 %v25
  %v237 = vadd.s32 %v233, 3
  %v238 = vand.u32 %v237, 3
  %vm239 = vcmp.lt.s32.totalorder %v238, 2
  %vm240 = vcmp.eq.s32.totalorder %v238, 0
  %v241 = vxor.u32 %v235, 2147483648
  %v242 = vsel %vm240, %v234, %v241
  %vm243 = vcmp.eq.s32.totalorder %v238, 2
  %v244 = vxor.u32 %v234, 2147483648
  %v245 = vsel %vm243, %v244, %v235
  %v246 = vsel %vm239, %v242, %v245
  %v247 = vsel %vm236, nan, %v246
  %v248 = vand.u32 2147483647, %v26
  %vm249 = vcmp.le.f32.partialorder %v248, 0.7853982
  %vm250 = vcmp.lt.s32.totalorder %v26, 0
  %v251 = vand.u32 %v26, 2139095040
  %v252 = vshrl.u32 %v251, 23
  %v253 = vsub.s32 %v252, 127
  %v254 = vand.u32 2147483647, %v26
  %v255 = vand.u32 %v254, 8388607
  %v256 = vor.u32 %v255, 8388608
  %v257 = vsub.s32 0, %v256
  %v258 = vadd.s32 %v253, 1
  %vm259 = vcmp.gt.s32.totalorder %v258, 0
  %v260 = vsel %vm259, %v258, 0
  %v261 = vshrl.u32 %v260, 5
  %v262 = vand.u32 %v260, 31
  %v263 = vsub.s32 32, %v262
  %v264 = vshrl.u32 683565275, %v263
  %v265 = vshll.u32 683565275, %v262
  %v266 = vshrl.u32 2475754826, %v263
  %v267 = vor.u32 %v265, %v266
  %v268 = vshll.u32 2475754826, %v262
  %v269 = vshrl.u32 2131351028, %v263
  %v270 = vor.u32 %v268, %v269
  %v271 = vshll.u32 2131351028, %v262
  %v272 = vshrl.u32 2102212464, %v263
  %v273 = vor.u32 %v271, %v272
  %v274 = vshll.u32 2102212464, %v262
  %v275 = vshrl.u32 920167782, %v263
  %v276 = vor.u32 %v274, %v275
  %v277 = vshll.u32 920167782, %v262
  %v278 = vshrl.u32 1326507024, %v263
  %v279 = vor.u32 %v277, %v278
  %vm280 = vcmp.lt.s32.totalorder %v261, 1
  %vm281 = vcmp.lt.s32.totalorder %v261, 2
  %vm282 = vcmp.lt.s32.totalorder %v261, 3
  %vm283 = vcmp.lt.s32.totalorder %v261, 4
  %v284 = vsel %vm280, %v264, %v267
  %v285 = vsel %vm283, %v273, 2102212464
  %v286 = vsel %vm282, %v270, %v285
  %v287 = vsel %vm281, %v284, %v286
  %v288 = vsel %vm280, %v267, %v270
  %v289 = vsel %vm283, %v276, 920167782
  %v290 = vsel %vm282, %v273, %v289
  %v291 = vsel %vm281, %v288, %v290
  %v292 = vsel %vm280, %v270, %v273
  %v293 = vsel %vm283, %v279, 1326507024
  %v294 = vsel %vm282, %v276, %v293
  %v295 = vsel %vm281, %v292, %v294
  %v296 = vshll.u32 %v256, 8
  %v297 = vmul.u32.u64.compose %v296, %v295
  %v298 = vextract.low.u32 %v297
  %v299 = vextract.high.u32 %v297
  %v300 = vmul.u32.u64.compose %v296, %v291
  %v301 = vextract.low.u32 %v300
  %v302 = vextract.high.u32 %v300
  %v303 = vmul.u32 %v296, %v287
  %v304 = vadd.s32 %v299, %v301
  %vm305 = vc.u32 %v299, %v301
  %v306 = vadd.s32 %v302, 1
  %v307 = vsel %vm305, %v306, %v302
  %v308 = vadd.s32 %v303, %v307
  %v309 = vadd.s32 %v308, 536870912
  %v310 = vshrl.u32 %v309, 30
  %v311 = vshll.u32 %v310, 30
  %v312 = vsub.s32 %v308, %v311
  %vm313 = vcmp.lt.s32.totalorder %v312, 0
  %v314 = vsub.s32 0, %v312
  %v315 = vsel %vm313, %v314, %v312
  %v316 = vclz %v315
  %v317 = vsub.s32 %v316, 2
  %vm318 = vcmp.gt.s32.totalorder 0, %v317
  %v319 = vsel %vm318, 0, %v317
  %v320 = vsub.s32 32, %v319
  %v321 = vshll.u32 %v312, %v319
  %v322 = vshrl.u32 %v304, %v320
  %v323 = vor.u32 %v321, %v322
  %v324 = vsub.s32 4294967266, %v319
  %v325 = vadd.s32 %v324, 127
  %v326 = vshll.u32 %v325, 23
  %v327 = vor.u32 4788187, %v326
  %v328 = vand.u32 2147483647, %v327
  %v330 = vcvt.s32.f32 %v323
  %v331 = vmul.f32 %v330, %v328
  %v332 = vxor.u32 %v331, 2147483648
  %v333 = vsel %vm250, %v332, %v331
  %v334 = vsub.s32 4, %v310
  %v335 = vsel %vm250, %v334, %v310
  %v336 = vsel %vm249, %v26, %v333
  %v337 = vsel %vm249, 0, %v335
  %v338 = vcosq.f32.pop %v336
  %v339 = vsinq.f32.pop %v336
  %vm340 = vweird.f32 %v26
  %v341 = vadd.s32 %v337, 3
  %v342 = vand.u32 %v341, 3
  %vm343 = vcmp.lt.s32.totalorder %v342, 2
  %vm344 = vcmp.eq.s32.totalorder %v342, 0
  %v345 = vxor.u32 %v339, 2147483648
  %v346 = vsel %vm344, %v338, %v345
  %vm347 = vcmp.eq.s32.totalorder %v342, 2
  %v348 = vxor.u32 %v338, 2147483648
  %v349 = vsel %vm347, %v348, %v339
  %v350 = vsel %vm343, %v346, %v349
  %v351 = vsel %vm340, nan, %v350
  %v352 = vand.u32 2147483647, %v27
  %vm353 = vcmp.le.f32.partialorder %v352, 0.7853982
  %vm354 = vcmp.lt.s32.totalorder %v27, 0
  %v355 = vand.u32 %v27, 2139095040
  %v356 = vshrl.u32 %v355, 23
  %v357 = vsub.s32 %v356, 127
  %v358 = vand.u32 2147483647, %v27
  %v359 = vand.u32 %v358, 8388607
  %v360 = vor.u32 %v359, 8388608
  %v361 = vsub.s32 0, %v360
  %v362 = vadd.s32 %v357, 1
  %vm363 = vcmp.gt.s32.totalorder %v362, 0
  %v364 = vsel %vm363, %v362, 0
  %v365 = vshrl.u32 %v364, 5
  %v366 = vand.u32 %v364, 31
  %v367 = vsub.s32 32, %v366
  %v368 = vshrl.u32 683565275, %v367
  %v369 = vshll.u32 683565275, %v366
  %v370 = vshrl.u32 2475754826, %v367
  %v371 = vor.u32 %v369, %v370
  %v372 = vshll.u32 2475754826, %v366
  %v373 = vshrl.u32 2131351028, %v367
  %v374 = vor.u32 %v372, %v373
  %v375 = vshll.u32 2131351028, %v366
  %v376 = vshrl.u32 2102212464, %v367
  %v377 = vor.u32 %v375, %v376
  %v378 = vshll.u32 2102212464, %v366
  %v379 = vshrl.u32 920167782, %v367
  %v380 = vor.u32 %v378, %v379
  %v381 = vshll.u32 920167782, %v366
  %v382 = vshrl.u32 1326507024, %v367
  %v383 = vor.u32 %v381, %v382
  %vm384 = vcmp.lt.s32.totalorder %v365, 1
  %vm385 = vcmp.lt.s32.totalorder %v365, 2
  %vm386 = vcmp.lt.s32.totalorder %v365, 3
  %vm387 = vcmp.lt.s32.totalorder %v365, 4
  %v388 = vsel %vm384, %v368, %v371
  %v389 = vsel %vm387, %v377, 2102212464
  %v390 = vsel %vm386, %v374, %v389
  %v391 = vsel %vm385, %v388, %v390
  %v392 = vsel %vm384, %v371, %v374
  %v393 = vsel %vm387, %v380, 920167782
  %v394 = vsel %vm386, %v377, %v393
  %v395 = vsel %vm385, %v392, %v394
  %v396 = vsel %vm384, %v374, %v377
  %v397 = vsel %vm387, %v383, 1326507024
  %v398 = vsel %vm386, %v380, %v397
  %v399 = vsel %vm385, %v396, %v398
  %v400 = vshll.u32 %v360, 8
  %v401 = vmul.u32.u64.compose %v400, %v399
  %v402 = vextract.low.u32 %v401
  %v403 = vextract.high.u32 %v401
  %v404 = vmul.u32.u64.compose %v400, %v395
  %v405 = vextract.low.u32 %v404
  %v406 = vextract.high.u32 %v404
  %v407 = vmul.u32 %v400, %v391
  %v408 = vadd.s32 %v403, %v405
  %vm409 = vc.u32 %v403, %v405
  %v410 = vadd.s32 %v406, 1
  %v411 = vsel %vm409, %v410, %v406
  %v412 = vadd.s32 %v407, %v411
  %v413 = vadd.s32 %v412, 536870912
  %v414 = vshrl.u32 %v413, 30
  %v415 = vshll.u32 %v414, 30
  %v416 = vsub.s32 %v412, %v415
  %vm417 = vcmp.lt.s32.totalorder %v416, 0
  %v418 = vsub.s32 0, %v416
  %v419 = vsel %vm417, %v418, %v416
  %v420 = vclz %v419
  %v421 = vsub.s32 %v420, 2
  %vm422 = vcmp.gt.s32.totalorder 0, %v421
  %v423 = vsel %vm422, 0, %v421
  %v424 = vsub.s32 32, %v423
  %v425 = vshll.u32 %v416, %v423
  %v426 = vshrl.u32 %v408, %v424
  %v427 = vor.u32 %v425, %v426
  %v428 = vsub.s32 4294967266, %v423
  %v429 = vadd.s32 %v428, 127
  %v430 = vshll.u32 %v429, 23
  %v431 = vor.u32 4788187, %v430
  %v432 = vand.u32 2147483647, %v431
  %v434 = vcvt.s32.f32 %v427
  %v435 = vmul.f32 %v434, %v432
  %v436 = vxor.u32 %v435, 2147483648
  %v437 = vsel %vm354, %v436, %v435
  %v438 = vsub.s32 4, %v414
  %v439 = vsel %vm354, %v438, %v414
  %v440 = vsel %vm353, %v27, %v437
  %v441 = vsel %vm353, 0, %v439
  %v442 = vcosq.f32.pop %v440
  %v443 = vsinq.f32.pop %v440
  %vm444 = vweird.f32 %v27
  %v445 = vadd.s32 %v441, 3
  %v446 = vand.u32 %v445, 3
  %vm447 = vcmp.lt.s32.totalorder %v446, 2
  %vm448 = vcmp.eq.s32.totalorder %v446, 0
  %v449 = vxor.u32 %v443, 2147483648
  %v450 = vsel %vm448, %v442, %v449
  %vm451 = vcmp.eq.s32.totalorder %v446, 2
  %v452 = vxor.u32 %v442, 2147483648
  %v453 = vsel %vm451, %v452, %v443
  %v454 = vsel %vm447, %v450, %v453
  %v455 = vsel %vm444, nan, %v454
  %v456 = vand.u32 2147483647, %v28
  %vm457 = vcmp.le.f32.partialorder %v456, 0.7853982
  %vm458 = vcmp.lt.s32.totalorder %v28, 0
  %v459 = vand.u32 %v28, 2139095040
  %v460 = vshrl.u32 %v459, 23
  %v461 = vsub.s32 %v460, 127
  %v462 = vand.u32 2147483647, %v28
  %v463 = vand.u32 %v462, 8388607
  %v464 = vor.u32 %v463, 8388608
  %v465 = vsub.s32 0, %v464
  %v466 = vadd.s32 %v461, 1
  %vm467 = vcmp.gt.s32.totalorder %v466, 0
  %v468 = vsel %vm467, %v466, 0
  %v469 = vshrl.u32 %v468, 5
  %v470 = vand.u32 %v468, 31
  %v471 = vsub.s32 32, %v470
  %v472 = vshrl.u32 683565275, %v471
  %v473 = vshll.u32 683565275, %v470
  %v474 = vshrl.u32 2475754826, %v471
  %v475 = vor.u32 %v473, %v474
  %v476 = vshll.u32 2475754826, %v470
  %v477 = vshrl.u32 2131351028, %v471
  %v478 = vor.u32 %v476, %v477
  %v479 = vshll.u32 2131351028, %v470
  %v480 = vshrl.u32 2102212464, %v471
  %v481 = vor.u32 %v479, %v480
  %v482 = vshll.u32 2102212464, %v470
  %v483 = vshrl.u32 920167782, %v471
  %v484 = vor.u32 %v482, %v483
  %v485 = vshll.u32 920167782, %v470
  %v486 = vshrl.u32 1326507024, %v471
  %v487 = vor.u32 %v485, %v486
  %vm488 = vcmp.lt.s32.totalorder %v469, 1
  %vm489 = vcmp.lt.s32.totalorder %v469, 2
  %vm490 = vcmp.lt.s32.totalorder %v469, 3
  %vm491 = vcmp.lt.s32.totalorder %v469, 4
  %v492 = vsel %vm488, %v472, %v475
  %v493 = vsel %vm491, %v481, 2102212464
  %v494 = vsel %vm490, %v478, %v493
  %v495 = vsel %vm489, %v492, %v494
  %v496 = vsel %vm488, %v475, %v478
  %v497 = vsel %vm491, %v484, 920167782
  %v498 = vsel %vm490, %v481, %v497
  %v499 = vsel %vm489, %v496, %v498
  %v500 = vsel %vm488, %v478, %v481
  %v501 = vsel %vm491, %v487, 1326507024
  %v502 = vsel %vm490, %v484, %v501
  %v503 = vsel %vm489, %v500, %v502
  %v504 = vshll.u32 %v464, 8
  %v505 = vmul.u32.u64.compose %v504, %v503
  %v506 = vextract.low.u32 %v505
  %v507 = vextract.high.u32 %v505
  %v508 = vmul.u32.u64.compose %v504, %v499
  %v509 = vextract.low.u32 %v508
  %v510 = vextract.high.u32 %v508
  %v511 = vmul.u32 %v504, %v495
  %v512 = vadd.s32 %v507, %v509
  %vm513 = vc.u32 %v507, %v509
  %v514 = vadd.s32 %v510, 1
  %v515 = vsel %vm513, %v514, %v510
  %v516 = vadd.s32 %v511, %v515
  %v517 = vadd.s32 %v516, 536870912
  %v518 = vshrl.u32 %v517, 30
  %v519 = vshll.u32 %v518, 30
  %v520 = vsub.s32 %v516, %v519
  %vm521 = vcmp.lt.s32.totalorder %v520, 0
  %v522 = vsub.s32 0, %v520
  %v523 = vsel %vm521, %v522, %v520
  %v524 = vclz %v523
  %v525 = vsub.s32 %v524, 2
  %vm526 = vcmp.gt.s32.totalorder 0, %v525
  %v527 = vsel %vm526, 0, %v525
  %v528 = vsub.s32 32, %v527
  %v529 = vshll.u32 %v520, %v527
  %v530 = vshrl.u32 %v512, %v528
  %v531 = vor.u32 %v529, %v530
  %v532 = vsub.s32 4294967266, %v527
  %v533 = vadd.s32 %v532, 127
  %v534 = vshll.u32 %v533, 23
  %v535 = vor.u32 4788187, %v534
  %v536 = vand.u32 2147483647, %v535
  %v538 = vcvt.s32.f32 %v531
  %v539 = vmul.f32 %v538, %v536
  %v540 = vxor.u32 %v539, 2147483648
  %v541 = vsel %vm458, %v540, %v539
  %v542 = vsub.s32 4, %v518
  %v543 = vsel %vm458, %v542, %v518
  %v544 = vsel %vm457, %v28, %v541
  %v545 = vsel %vm457, 0, %v543
  %v546 = vcosq.f32.pop %v544
  %v547 = vsinq.f32.pop %v544
  %vm548 = vweird.f32 %v28
  %v549 = vadd.s32 %v545, 3
  %v550 = vand.u32 %v549, 3
  %vm551 = vcmp.lt.s32.totalorder %v550, 2
  %vm552 = vcmp.eq.s32.totalorder %v550, 0
  %v553 = vxor.u32 %v547, 2147483648
  %v554 = vsel %vm552, %v546, %v553
  %vm555 = vcmp.eq.s32.totalorder %v550, 2
  %v556 = vxor.u32 %v546, 2147483648
  %v557 = vsel %vm555, %v556, %v547
  %v558 = vsel %vm551, %v554, %v557
  %v559 = vsel %vm548, nan, %v558
  %v560 = vand.u32 2147483647, %v29
  %vm561 = vcmp.le.f32.partialorder %v560, 0.7853982
  %vm562 = vcmp.lt.s32.totalorder %v29, 0
  %v563 = vand.u32 %v29, 2139095040
  %v564 = vshrl.u32 %v563, 23
  %v565 = vsub.s32 %v564, 127
  %v566 = vand.u32 2147483647, %v29
  %v567 = vand.u32 %v566, 8388607
  %v568 = vor.u32 %v567, 8388608
  %v569 = vsub.s32 0, %v568
  %v570 = vadd.s32 %v565, 1
  %vm571 = vcmp.gt.s32.totalorder %v570, 0
  %v572 = vsel %vm571, %v570, 0
  %v573 = vshrl.u32 %v572, 5
  %v574 = vand.u32 %v572, 31
  %v575 = vsub.s32 32, %v574
  %v576 = vshrl.u32 683565275, %v575
  %v577 = vshll.u32 683565275, %v574
  %v578 = vshrl.u32 2475754826, %v575
  %v579 = vor.u32 %v577, %v578
  %v580 = vshll.u32 2475754826, %v574
  %v581 = vshrl.u32 2131351028, %v575
  %v582 = vor.u32 %v580, %v581
  %v583 = vshll.u32 2131351028, %v574
  %v584 = vshrl.u32 2102212464, %v575
  %v585 = vor.u32 %v583, %v584
  %v586 = vshll.u32 2102212464, %v574
  %v587 = vshrl.u32 920167782, %v575
  %v588 = vor.u32 %v586, %v587
  %v589 = vshll.u32 920167782, %v574
  %v590 = vshrl.u32 1326507024, %v575
  %v591 = vor.u32 %v589, %v590
  %vm592 = vcmp.lt.s32.totalorder %v573, 1
  %vm593 = vcmp.lt.s32.totalorder %v573, 2
  %vm594 = vcmp.lt.s32.totalorder %v573, 3
  %vm595 = vcmp.lt.s32.totalorder %v573, 4
  %v596 = vsel %vm592, %v576, %v579
  %v597 = vsel %vm595, %v585, 2102212464
  %v598 = vsel %vm594, %v582, %v597
  %v599 = vsel %vm593, %v596, %v598
  %v600 = vsel %vm592, %v579, %v582
  %v601 = vsel %vm595, %v588, 920167782
  %v602 = vsel %vm594, %v585, %v601
  %v603 = vsel %vm593, %v600, %v602
  %v604 = vsel %vm592, %v582, %v585
  %v605 = vsel %vm595, %v591, 1326507024
  %v606 = vsel %vm594, %v588, %v605
  %v607 = vsel %vm593, %v604, %v606
  %v608 = vshll.u32 %v568, 8
  %v609 = vmul.u32.u64.compose %v608, %v607
  %v610 = vextract.low.u32 %v609
  %v611 = vextract.high.u32 %v609
  %v612 = vmul.u32.u64.compose %v608, %v603
  %v613 = vextract.low.u32 %v612
  %v614 = vextract.high.u32 %v612
  %v615 = vmul.u32 %v608, %v599
  %v616 = vadd.s32 %v611, %v613
  %vm617 = vc.u32 %v611, %v613
  %v618 = vadd.s32 %v614, 1
  %v619 = vsel %vm617, %v618, %v614
  %v620 = vadd.s32 %v615, %v619
  %v621 = vadd.s32 %v620, 536870912
  %v622 = vshrl.u32 %v621, 30
  %v623 = vshll.u32 %v622, 30
  %v624 = vsub.s32 %v620, %v623
  %vm625 = vcmp.lt.s32.totalorder %v624, 0
  %v626 = vsub.s32 0, %v624
  %v627 = vsel %vm625, %v626, %v624
  %v628 = vclz %v627
  %v629 = vsub.s32 %v628, 2
  %vm630 = vcmp.gt.s32.totalorder 0, %v629
  %v631 = vsel %vm630, 0, %v629
  %v632 = vsub.s32 32, %v631
  %v633 = vshll.u32 %v624, %v631
  %v634 = vshrl.u32 %v616, %v632
  %v635 = vor.u32 %v633, %v634
  %v636 = vsub.s32 4294967266, %v631
  %v637 = vadd.s32 %v636, 127
  %v638 = vshll.u32 %v637, 23
  %v639 = vor.u32 4788187, %v638
  %v640 = vand.u32 2147483647, %v639
  %v642 = vcvt.s32.f32 %v635
  %v643 = vmul.f32 %v642, %v640
  %v644 = vxor.u32 %v643, 2147483648
  %v645 = vsel %vm562, %v644, %v643
  %v646 = vsub.s32 4, %v622
  %v647 = vsel %vm562, %v646, %v622
  %v648 = vsel %vm561, %v29, %v645
  %v649 = vsel %vm561, 0, %v647
  %v650 = vcosq.f32.pop %v648
  %v651 = vsinq.f32.pop %v648
  %vm652 = vweird.f32 %v29
  %v653 = vadd.s32 %v649, 3
  %v654 = vand.u32 %v653, 3
  %vm655 = vcmp.lt.s32.totalorder %v654, 2
  %vm656 = vcmp.eq.s32.totalorder %v654, 0
  %v657 = vxor.u32 %v651, 2147483648
  %v658 = vsel %vm656, %v650, %v657
  %vm659 = vcmp.eq.s32.totalorder %v654, 2
  %v660 = vxor.u32 %v650, 2147483648
  %v661 = vsel %vm659, %v660, %v651
  %v662 = vsel %vm655, %v658, %v661
  %v663 = vsel %vm652, nan, %v662
  %v664 = vand.u32 2147483647, %v30
  %vm665 = vcmp.le.f32.partialorder %v664, 0.7853982
  %vm666 = vcmp.lt.s32.totalorder %v30, 0
  %v667 = vand.u32 %v30, 2139095040
  %v668 = vshrl.u32 %v667, 23
  %v669 = vsub.s32 %v668, 127
  %v670 = vand.u32 2147483647, %v30
  %v671 = vand.u32 %v670, 8388607
  %v672 = vor.u32 %v671, 8388608
  %v673 = vsub.s32 0, %v672
  %v674 = vadd.s32 %v669, 1
  %vm675 = vcmp.gt.s32.totalorder %v674, 0
  %v676 = vsel %vm675, %v674, 0
  %v677 = vshrl.u32 %v676, 5
  %v678 = vand.u32 %v676, 31
  %v679 = vsub.s32 32, %v678
  %v680 = vshrl.u32 683565275, %v679
  %v681 = vshll.u32 683565275, %v678
  %v682 = vshrl.u32 2475754826, %v679
  %v683 = vor.u32 %v681, %v682
  %v684 = vshll.u32 2475754826, %v678
  %v685 = vshrl.u32 2131351028, %v679
  %v686 = vor.u32 %v684, %v685
  %v687 = vshll.u32 2131351028, %v678
  %v688 = vshrl.u32 2102212464, %v679
  %v689 = vor.u32 %v687, %v688
  %v690 = vshll.u32 2102212464, %v678
  %v691 = vshrl.u32 920167782, %v679
  %v692 = vor.u32 %v690, %v691
  %v693 = vshll.u32 920167782, %v678
  %v694 = vshrl.u32 1326507024, %v679
  %v695 = vor.u32 %v693, %v694
  %vm696 = vcmp.lt.s32.totalorder %v677, 1
  %vm697 = vcmp.lt.s32.totalorder %v677, 2
  %vm698 = vcmp.lt.s32.totalorder %v677, 3
  %vm699 = vcmp.lt.s32.totalorder %v677, 4
  %v700 = vsel %vm696, %v680, %v683
  %v701 = vsel %vm699, %v689, 2102212464
  %v702 = vsel %vm698, %v686, %v701
  %v703 = vsel %vm697, %v700, %v702
  %v704 = vsel %vm696, %v683, %v686
  %v705 = vsel %vm699, %v692, 920167782
  %v706 = vsel %vm698, %v689, %v705
  %v707 = vsel %vm697, %v704, %v706
  %v708 = vsel %vm696, %v686, %v689
  %v709 = vsel %vm699, %v695, 1326507024
  %v710 = vsel %vm698, %v692, %v709
  %v711 = vsel %vm697, %v708, %v710
  %v712 = vshll.u32 %v672, 8
  %v713 = vmul.u32.u64.compose %v712, %v711
  %v714 = vextract.low.u32 %v713
  %v715 = vextract.high.u32 %v713
  %v716 = vmul.u32.u64.compose %v712, %v707
  %v717 = vextract.low.u32 %v716
  %v718 = vextract.high.u32 %v716
  %v719 = vmul.u32 %v712, %v703
  %v720 = vadd.s32 %v715, %v717
  %vm721 = vc.u32 %v715, %v717
  %v722 = vadd.s32 %v718, 1
  %v723 = vsel %vm721, %v722, %v718
  %v724 = vadd.s32 %v719, %v723
  %v725 = vadd.s32 %v724, 536870912
  %v726 = vshrl.u32 %v725, 30
  %v727 = vshll.u32 %v726, 30
  %v728 = vsub.s32 %v724, %v727
  %vm729 = vcmp.lt.s32.totalorder %v728, 0
  %v730 = vsub.s32 0, %v728
  %v731 = vsel %vm729, %v730, %v728
  %v732 = vclz %v731
  %v733 = vsub.s32 %v732, 2
  %vm734 = vcmp.gt.s32.totalorder 0, %v733
  %v735 = vsel %vm734, 0, %v733
  %v736 = vsub.s32 32, %v735
  %v737 = vshll.u32 %v728, %v735
  %v738 = vshrl.u32 %v720, %v736
  %v739 = vor.u32 %v737, %v738
  %v740 = vsub.s32 4294967266, %v735
  %v741 = vadd.s32 %v740, 127
  %v742 = vshll.u32 %v741, 23
  %v743 = vor.u32 4788187, %v742
  %v744 = vand.u32 2147483647, %v743
  %v746 = vcvt.s32.f32 %v739
  %v747 = vmul.f32 %v746, %v744
  %v748 = vxor.u32 %v747, 2147483648
  %v749 = vsel %vm666, %v748, %v747
  %v750 = vsub.s32 4, %v726
  %v751 = vsel %vm666, %v750, %v726
  %v752 = vsel %vm665, %v30, %v749
  %v753 = vsel %vm665, 0, %v751
  %v754 = vcosq.f32.pop %v752
  %v755 = vsinq.f32.pop %v752
  %vm756 = vweird.f32 %v30
  %v757 = vadd.s32 %v753, 3
  %v758 = vand.u32 %v757, 3
  %vm759 = vcmp.lt.s32.totalorder %v758, 2
  %vm760 = vcmp.eq.s32.totalorder %v758, 0
  %v761 = vxor.u32 %v755, 2147483648
  %v762 = vsel %vm760, %v754, %v761
  %vm763 = vcmp.eq.s32.totalorder %v758, 2
  %v764 = vxor.u32 %v754, 2147483648
  %v765 = vsel %vm763, %v764, %v755
  %v766 = vsel %vm759, %v762, %v765
  %v767 = vsel %vm756, nan, %v766
  %v768 = vand.u32 2147483647, %v31
  %vm769 = vcmp.le.f32.partialorder %v768, 0.7853982
  %vm770 = vcmp.lt.s32.totalorder %v31, 0
  %v771 = vand.u32 %v31, 2139095040
  %v772 = vshrl.u32 %v771, 23
  %v773 = vsub.s32 %v772, 127
  %v774 = vand.u32 2147483647, %v31
  %v775 = vand.u32 %v774, 8388607
  %v776 = vor.u32 %v775, 8388608
  %v777 = vsub.s32 0, %v776
  %v778 = vadd.s32 %v773, 1
  %vm779 = vcmp.gt.s32.totalorder %v778, 0
  %v780 = vsel %vm779, %v778, 0
  %v781 = vshrl.u32 %v780, 5
  %v782 = vand.u32 %v780, 31
  %v783 = vsub.s32 32, %v782
  %v784 = vshrl.u32 683565275, %v783
  %v785 = vshll.u32 683565275, %v782
  %v786 = vshrl.u32 2475754826, %v783
  %v787 = vor.u32 %v785, %v786
  %v788 = vshll.u32 2475754826, %v782
  %v789 = vshrl.u32 2131351028, %v783
  %v790 = vor.u32 %v788, %v789
  %v791 = vshll.u32 2131351028, %v782
  %v792 = vshrl.u32 2102212464, %v783
  %v793 = vor.u32 %v791, %v792
  %v794 = vshll.u32 2102212464, %v782
  %v795 = vshrl.u32 920167782, %v783
  %v796 = vor.u32 %v794, %v795
  %v797 = vshll.u32 920167782, %v782
  %v798 = vshrl.u32 1326507024, %v783
  %v799 = vor.u32 %v797, %v798
  %vm800 = vcmp.lt.s32.totalorder %v781, 1
  %vm801 = vcmp.lt.s32.totalorder %v781, 2
  %vm802 = vcmp.lt.s32.totalorder %v781, 3
  %vm803 = vcmp.lt.s32.totalorder %v781, 4
  %v804 = vsel %vm800, %v784, %v787
  %v805 = vsel %vm803, %v793, 2102212464
  %v806 = vsel %vm802, %v790, %v805
  %v807 = vsel %vm801, %v804, %v806
  %v808 = vsel %vm800, %v787, %v790
  %v809 = vsel %vm803, %v796, 920167782
  %v810 = vsel %vm802, %v793, %v809
  %v811 = vsel %vm801, %v808, %v810
  %v812 = vsel %vm800, %v790, %v793
  %v813 = vsel %vm803, %v799, 1326507024
  %v814 = vsel %vm802, %v796, %v813
  %v815 = vsel %vm801, %v812, %v814
  %v816 = vshll.u32 %v776, 8
  %v817 = vmul.u32.u64.compose %v816, %v815
  %v818 = vextract.low.u32 %v817
  %v819 = vextract.high.u32 %v817
  %v820 = vmul.u32.u64.compose %v816, %v811
  %v821 = vextract.low.u32 %v820
  %v822 = vextract.high.u32 %v820
  %v823 = vmul.u32 %v816, %v807
  %v824 = vadd.s32 %v819, %v821
  %vm825 = vc.u32 %v819, %v821
  %v826 = vadd.s32 %v822, 1
  %v827 = vsel %vm825, %v826, %v822
  %v828 = vadd.s32 %v823, %v827
  %v829 = vadd.s32 %v828, 536870912
  %v830 = vshrl.u32 %v829, 30
  %v831 = vshll.u32 %v830, 30
  %v832 = vsub.s32 %v828, %v831
  %vm833 = vcmp.lt.s32.totalorder %v832, 0
  %v834 = vsub.s32 0, %v832
  %v835 = vsel %vm833, %v834, %v832
  %v836 = vclz %v835
  %v837 = vsub.s32 %v836, 2
  %vm838 = vcmp.gt.s32.totalorder 0, %v837
  %v839 = vsel %vm838, 0, %v837
  %v840 = vsub.s32 32, %v839
  %v841 = vshll.u32 %v832, %v839
  %v842 = vshrl.u32 %v824, %v840
  %v843 = vor.u32 %v841, %v842
  %v844 = vsub.s32 4294967266, %v839
  %v845 = vadd.s32 %v844, 127
  %v846 = vshll.u32 %v845, 23
  %v847 = vor.u32 4788187, %v846
  %v848 = vand.u32 2147483647, %v847
  %v850 = vcvt.s32.f32 %v843
  %v851 = vmul.f32 %v850, %v848
  %v852 = vxor.u32 %v851, 2147483648
  %v853 = vsel %vm770, %v852, %v851
  %v854 = vsub.s32 4, %v830
  %v855 = vsel %vm770, %v854, %v830
  %v856 = vsel %vm769, %v31, %v853
  %v857 = vsel %vm769, 0, %v855
  %v858 = vcosq.f32.pop %v856
  %v859 = vsinq.f32.pop %v856
  %vm860 = vweird.f32 %v31
  %v861 = vadd.s32 %v857, 3
  %v862 = vand.u32 %v861, 3
  %vm863 = vcmp.lt.s32.totalorder %v862, 2
  %vm864 = vcmp.eq.s32.totalorder %v862, 0
  %v865 = vxor.u32 %v859, 2147483648
  %v866 = vsel %vm864, %v858, %v865
  %vm867 = vcmp.eq.s32.totalorder %v862, 2
  %v868 = vxor.u32 %v858, 2147483648
  %v869 = vsel %vm867, %v868, %v859
  %v870 = vsel %vm863, %v866, %v869
  %v871 = vsel %vm860, nan, %v870
  %v872 = vand.u32 2147483647, %v32
  %vm873 = vcmp.le.f32.partialorder %v872, 0.7853982
  %vm874 = vcmp.lt.s32.totalorder %v32, 0
  %v875 = vand.u32 %v32, 2139095040
  %v876 = vshrl.u32 %v875, 23
  %v877 = vsub.s32 %v876, 127
  %v878 = vand.u32 2147483647, %v32
  %v879 = vand.u32 %v878, 8388607
  %v880 = vor.u32 %v879, 8388608
  %v881 = vsub.s32 0, %v880
  %v882 = vadd.s32 %v877, 1
  %vm883 = vcmp.gt.s32.totalorder %v882, 0
  %v884 = vsel %vm883, %v882, 0
  %v885 = vshrl.u32 %v884, 5
  %v886 = vand.u32 %v884, 31
  %v887 = vsub.s32 32, %v886
  %v888 = vshrl.u32 683565275, %v887
  %v889 = vshll.u32 683565275, %v886
  %v890 = vshrl.u32 2475754826, %v887
  %v891 = vor.u32 %v889, %v890
  %v892 = vshll.u32 2475754826, %v886
  %v893 = vshrl.u32 2131351028, %v887
  %v894 = vor.u32 %v892, %v893
  %v895 = vshll.u32 2131351028, %v886
  %v896 = vshrl.u32 2102212464, %v887
  %v897 = vor.u32 %v895, %v896
  %v898 = vshll.u32 2102212464, %v886
  %v899 = vshrl.u32 920167782, %v887
  %v900 = vor.u32 %v898, %v899
  %v901 = vshll.u32 920167782, %v886
  %v902 = vshrl.u32 1326507024, %v887
  %v903 = vor.u32 %v901, %v902
  %vm904 = vcmp.lt.s32.totalorder %v885, 1
  %vm905 = vcmp.lt.s32.totalorder %v885, 2
  %vm906 = vcmp.lt.s32.totalorder %v885, 3
  %vm907 = vcmp.lt.s32.totalorder %v885, 4
  %v908 = vsel %vm904, %v888, %v891
  %v909 = vsel %vm907, %v897, 2102212464
  %v910 = vsel %vm906, %v894, %v909
  %v911 = vsel %vm905, %v908, %v910
  %v912 = vsel %vm904, %v891, %v894
  %v913 = vsel %vm907, %v900, 920167782
  %v914 = vsel %vm906, %v897, %v913
  %v915 = vsel %vm905, %v912, %v914
  %v916 = vsel %vm904, %v894, %v897
  %v917 = vsel %vm907, %v903, 1326507024
  %v918 = vsel %vm906, %v900, %v917
  %v919 = vsel %vm905, %v916, %v918
  %v920 = vshll.u32 %v880, 8
  %v921 = vmul.u32.u64.compose %v920, %v919
  %v922 = vextract.low.u32 %v921
  %v923 = vextract.high.u32 %v921
  %v924 = vmul.u32.u64.compose %v920, %v915
  %v925 = vextract.low.u32 %v924
  %v926 = vextract.high.u32 %v924
  %v927 = vmul.u32 %v920, %v911
  %v928 = vadd.s32 %v923, %v925
  %vm929 = vc.u32 %v923, %v925
  %v930 = vadd.s32 %v926, 1
  %v931 = vsel %vm929, %v930, %v926
  %v932 = vadd.s32 %v927, %v931
  %v933 = vadd.s32 %v932, 536870912
  %v934 = vshrl.u32 %v933, 30
  %v935 = vshll.u32 %v934, 30
  %v936 = vsub.s32 %v932, %v935
  %vm937 = vcmp.lt.s32.totalorder %v936, 0
  %v938 = vsub.s32 0, %v936
  %v939 = vsel %vm937, %v938, %v936
  %v940 = vclz %v939
  %v941 = vsub.s32 %v940, 2
  %vm942 = vcmp.gt.s32.totalorder 0, %v941
  %v943 = vsel %vm942, 0, %v941
  %v944 = vsub.s32 32, %v943
  %v945 = vshll.u32 %v936, %v943
  %v946 = vshrl.u32 %v928, %v944
  %v947 = vor.u32 %v945, %v946
  %v948 = vsub.s32 4294967266, %v943
  %v949 = vadd.s32 %v948, 127
  %v950 = vshll.u32 %v949, 23
  %v951 = vor.u32 4788187, %v950
  %v952 = vand.u32 2147483647, %v951
  %v954 = vcvt.s32.f32 %v947
  %v955 = vmul.f32 %v954, %v952
  %v956 = vxor.u32 %v955, 2147483648
  %v957 = vsel %vm874, %v956, %v955
  %v958 = vsub.s32 4, %v934
  %v959 = vsel %vm874, %v958, %v934
  %v960 = vsel %vm873, %v32, %v957
  %v961 = vsel %vm873, 0, %v959
  %v962 = vcosq.f32.pop %v960
  %v963 = vsinq.f32.pop %v960
  %vm964 = vweird.f32 %v32
  %v965 = vadd.s32 %v961, 3
  %v966 = vand.u32 %v965, 3
  %vm967 = vcmp.lt.s32.totalorder %v966, 2
  %vm968 = vcmp.eq.s32.totalorder %v966, 0
  %v969 = vxor.u32 %v963, 2147483648
  %v970 = vsel %vm968, %v962, %v969
  %vm971 = vcmp.eq.s32.totalorder %v966, 2
  %v972 = vxor.u32 %v962, 2147483648
  %v973 = vsel %vm971, %v972, %v963
  %v974 = vsel %vm967, %v970, %v973
  %v975 = vsel %vm964, nan, %v974
  %v976 = vand.u32 2147483647, %v33
  %vm977 = vcmp.le.f32.partialorder %v976, 0.7853982
  %vm978 = vcmp.lt.s32.totalorder %v33, 0
  %v979 = vand.u32 %v33, 2139095040
  %v980 = vshrl.u32 %v979, 23
  %v981 = vsub.s32 %v980, 127
  %v982 = vand.u32 2147483647, %v33
  %v983 = vand.u32 %v982, 8388607
  %v984 = vor.u32 %v983, 8388608
  %v985 = vsub.s32 0, %v984
  %v986 = vadd.s32 %v981, 1
  %vm987 = vcmp.gt.s32.totalorder %v986, 0
  %v988 = vsel %vm987, %v986, 0
  %v989 = vshrl.u32 %v988, 5
  %v990 = vand.u32 %v988, 31
  %v991 = vsub.s32 32, %v990
  %v992 = vshrl.u32 683565275, %v991
  %v993 = vshll.u32 683565275, %v990
  %v994 = vshrl.u32 2475754826, %v991
  %v995 = vor.u32 %v993, %v994
  %v996 = vshll.u32 2475754826, %v990
  %v997 = vshrl.u32 2131351028, %v991
  %v998 = vor.u32 %v996, %v997
  %v999 = vshll.u32 2131351028, %v990
  %v1000 = vshrl.u32 2102212464, %v991
  %v1001 = vor.u32 %v999, %v1000
  %v1002 = vshll.u32 2102212464, %v990
  %v1003 = vshrl.u32 920167782, %v991
  %v1004 = vor.u32 %v1002, %v1003
  %v1005 = vshll.u32 920167782, %v990
  %v1006 = vshrl.u32 1326507024, %v991
  %v1007 = vor.u32 %v1005, %v1006
  %vm1008 = vcmp.lt.s32.totalorder %v989, 1
  %vm1009 = vcmp.lt.s32.totalorder %v989, 2
  %vm1010 = vcmp.lt.s32.totalorder %v989, 3
  %vm1011 = vcmp.lt.s32.totalorder %v989, 4
  %v1012 = vsel %vm1008, %v992, %v995
  %v1013 = vsel %vm1011, %v1001, 2102212464
  %v1014 = vsel %vm1010, %v998, %v1013
  %v1015 = vsel %vm1009, %v1012, %v1014
  %v1016 = vsel %vm1008, %v995, %v998
  %v1017 = vsel %vm1011, %v1004, 920167782
  %v1018 = vsel %vm1010, %v1001, %v1017
  %v1019 = vsel %vm1009, %v1016, %v1018
  %v1020 = vsel %vm1008, %v998, %v1001
  %v1021 = vsel %vm1011, %v1007, 1326507024
  %v1022 = vsel %vm1010, %v1004, %v1021
  %v1023 = vsel %vm1009, %v1020, %v1022
  %v1024 = vshll.u32 %v984, 8
  %v1025 = vmul.u32.u64.compose %v1024, %v1023
  %v1026 = vextract.low.u32 %v1025
  %v1027 = vextract.high.u32 %v1025
  %v1028 = vmul.u32.u64.compose %v1024, %v1019
  %v1029 = vextract.low.u32 %v1028
  %v1030 = vextract.high.u32 %v1028
  %v1031 = vmul.u32 %v1024, %v1015
  %v1032 = vadd.s32 %v1027, %v1029
  %vm1033 = vc.u32 %v1027, %v1029
  %v1034 = vadd.s32 %v1030, 1
  %v1035 = vsel %vm1033, %v1034, %v1030
  %v1036 = vadd.s32 %v1031, %v1035
  %v1037 = vadd.s32 %v1036, 536870912
  %v1038 = vshrl.u32 %v1037, 30
  %v1039 = vshll.u32 %v1038, 30
  %v1040 = vsub.s32 %v1036, %v1039
  %vm1041 = vcmp.lt.s32.totalorder %v1040, 0
  %v1042 = vsub.s32 0, %v1040
  %v1043 = vsel %vm1041, %v1042, %v1040
  %v1044 = vclz %v1043
  %v1045 = vsub.s32 %v1044, 2
  %vm1046 = vcmp.gt.s32.totalorder 0, %v1045
  %v1047 = vsel %vm1046, 0, %v1045
  %v1048 = vsub.s32 32, %v1047
  %v1049 = vshll.u32 %v1040, %v1047
  %v1050 = vshrl.u32 %v1032, %v1048
  %v1051 = vor.u32 %v1049, %v1050
  %v1052 = vsub.s32 4294967266, %v1047
  %v1053 = vadd.s32 %v1052, 127
  %v1054 = vshll.u32 %v1053, 23
  %v1055 = vor.u32 4788187, %v1054
  %v1056 = vand.u32 2147483647, %v1055
  %v1058 = vcvt.s32.f32 %v1051
  %v1059 = vmul.f32 %v1058, %v1056
  %v1060 = vxor.u32 %v1059, 2147483648
  %v1061 = vsel %vm978, %v1060, %v1059
  %v1062 = vsub.s32 4, %v1038
  %v1063 = vsel %vm978, %v1062, %v1038
  %v1064 = vsel %vm977, %v33, %v1061
  %v1065 = vsel %vm977, 0, %v1063
  %v1066 = vcosq.f32.pop %v1064
  %v1067 = vsinq.f32.pop %v1064
  %vm1068 = vweird.f32 %v33
  %v1069 = vadd.s32 %v1065, 3
  %v1070 = vand.u32 %v1069, 3
  %vm1071 = vcmp.lt.s32.totalorder %v1070, 2
  %vm1072 = vcmp.eq.s32.totalorder %v1070, 0
  %v1073 = vxor.u32 %v1067, 2147483648
  %v1074 = vsel %vm1072, %v1066, %v1073
  %vm1075 = vcmp.eq.s32.totalorder %v1070, 2
  %v1076 = vxor.u32 %v1066, 2147483648
  %v1077 = vsel %vm1075, %v1076, %v1067
  %v1078 = vsel %vm1071, %v1074, %v1077
  %v1079 = vsel %vm1068, nan, %v1078
  %v1080 = vand.u32 2147483647, %v34
  %vm1081 = vcmp.le.f32.partialorder %v1080, 0.7853982
  %vm1082 = vcmp.lt.s32.totalorder %v34, 0
  %v1083 = vand.u32 %v34, 2139095040
  %v1084 = vshrl.u32 %v1083, 23
  %v1085 = vsub.s32 %v1084, 127
  %v1086 = vand.u32 2147483647, %v34
  %v1087 = vand.u32 %v1086, 8388607
  %v1088 = vor.u32 %v1087, 8388608
  %v1089 = vsub.s32 0, %v1088
  %v1090 = vadd.s32 %v1085, 1
  %vm1091 = vcmp.gt.s32.totalorder %v1090, 0
  %v1092 = vsel %vm1091, %v1090, 0
  %v1093 = vshrl.u32 %v1092, 5
  %v1094 = vand.u32 %v1092, 31
  %v1095 = vsub.s32 32, %v1094
  %v1096 = vshrl.u32 683565275, %v1095
  %v1097 = vshll.u32 683565275, %v1094
  %v1098 = vshrl.u32 2475754826, %v1095
  %v1099 = vor.u32 %v1097, %v1098
  %v1100 = vshll.u32 2475754826, %v1094
  %v1101 = vshrl.u32 2131351028, %v1095
  %v1102 = vor.u32 %v1100, %v1101
  %v1103 = vshll.u32 2131351028, %v1094
  %v1104 = vshrl.u32 2102212464, %v1095
  %v1105 = vor.u32 %v1103, %v1104
  %v1106 = vshll.u32 2102212464, %v1094
  %v1107 = vshrl.u32 920167782, %v1095
  %v1108 = vor.u32 %v1106, %v1107
  %v1109 = vshll.u32 920167782, %v1094
  %v1110 = vshrl.u32 1326507024, %v1095
  %v1111 = vor.u32 %v1109, %v1110
  %vm1112 = vcmp.lt.s32.totalorder %v1093, 1
  %vm1113 = vcmp.lt.s32.totalorder %v1093, 2
  %vm1114 = vcmp.lt.s32.totalorder %v1093, 3
  %vm1115 = vcmp.lt.s32.totalorder %v1093, 4
  %v1116 = vsel %vm1112, %v1096, %v1099
  %v1117 = vsel %vm1115, %v1105, 2102212464
  %v1118 = vsel %vm1114, %v1102, %v1117
  %v1119 = vsel %vm1113, %v1116, %v1118
  %v1120 = vsel %vm1112, %v1099, %v1102
  %v1121 = vsel %vm1115, %v1108, 920167782
  %v1122 = vsel %vm1114, %v1105, %v1121
  %v1123 = vsel %vm1113, %v1120, %v1122
  %v1124 = vsel %vm1112, %v1102, %v1105
  %v1125 = vsel %vm1115, %v1111, 1326507024
  %v1126 = vsel %vm1114, %v1108, %v1125
  %v1127 = vsel %vm1113, %v1124, %v1126
  %v1128 = vshll.u32 %v1088, 8
  %v1129 = vmul.u32.u64.compose %v1128, %v1127
  %v1130 = vextract.low.u32 %v1129
  %v1131 = vextract.high.u32 %v1129
  %v1132 = vmul.u32.u64.compose %v1128, %v1123
  %v1133 = vextract.low.u32 %v1132
  %v1134 = vextract.high.u32 %v1132
  %v1135 = vmul.u32 %v1128, %v1119
  %v1136 = vadd.s32 %v1131, %v1133
  %vm1137 = vc.u32 %v1131, %v1133
  %v1138 = vadd.s32 %v1134, 1
  %v1139 = vsel %vm1137, %v1138, %v1134
  %v1140 = vadd.s32 %v1135, %v1139
  %v1141 = vadd.s32 %v1140, 536870912
  %v1142 = vshrl.u32 %v1141, 30
  %v1143 = vshll.u32 %v1142, 30
  %v1144 = vsub.s32 %v1140, %v1143
  %vm1145 = vcmp.lt.s32.totalorder %v1144, 0
  %v1146 = vsub.s32 0, %v1144
  %v1147 = vsel %vm1145, %v1146, %v1144
  %v1148 = vclz %v1147
  %v1149 = vsub.s32 %v1148, 2
  %vm1150 = vcmp.gt.s32.totalorder 0, %v1149
  %v1151 = vsel %vm1150, 0, %v1149
  %v1152 = vsub.s32 32, %v1151
  %v1153 = vshll.u32 %v1144, %v1151
  %v1154 = vshrl.u32 %v1136, %v1152
  %v1155 = vor.u32 %v1153, %v1154
  %v1156 = vsub.s32 4294967266, %v1151
  %v1157 = vadd.s32 %v1156, 127
  %v1158 = vshll.u32 %v1157, 23
  %v1159 = vor.u32 4788187, %v1158
  %v1160 = vand.u32 2147483647, %v1159
  %v1162 = vcvt.s32.f32 %v1155
  %v1163 = vmul.f32 %v1162, %v1160
  %v1164 = vxor.u32 %v1163, 2147483648
  %v1165 = vsel %vm1082, %v1164, %v1163
  %v1166 = vsub.s32 4, %v1142
  %v1167 = vsel %vm1082, %v1166, %v1142
  %v1168 = vsel %vm1081, %v34, %v1165
  %v1169 = vsel %vm1081, 0, %v1167
  %v1170 = vcosq.f32.pop %v1168
  %v1171 = vsinq.f32.pop %v1168
  %vm1172 = vweird.f32 %v34
  %v1173 = vadd.s32 %v1169, 3
  %v1174 = vand.u32 %v1173, 3
  %vm1175 = vcmp.lt.s32.totalorder %v1174, 2
  %vm1176 = vcmp.eq.s32.totalorder %v1174, 0
  %v1177 = vxor.u32 %v1171, 2147483648
  %v1178 = vsel %vm1176, %v1170, %v1177
  %vm1179 = vcmp.eq.s32.totalorder %v1174, 2
  %v1180 = vxor.u32 %v1170, 2147483648
  %v1181 = vsel %vm1179, %v1180, %v1171
  %v1182 = vsel %vm1175, %v1178, %v1181
  %v1183 = vsel %vm1172, nan, %v1182
  %v1184 = vand.u32 2147483647, %v35
  %vm1185 = vcmp.le.f32.partialorder %v1184, 0.7853982
  %vm1186 = vcmp.lt.s32.totalorder %v35, 0
  %v1187 = vand.u32 %v35, 2139095040
  %v1188 = vshrl.u32 %v1187, 23
  %v1189 = vsub.s32 %v1188, 127
  %v1190 = vand.u32 2147483647, %v35
  %v1191 = vand.u32 %v1190, 8388607
  %v1192 = vor.u32 %v1191, 8388608
  %v1193 = vsub.s32 0, %v1192
  %v1194 = vadd.s32 %v1189, 1
  %vm1195 = vcmp.gt.s32.totalorder %v1194, 0
  %v1196 = vsel %vm1195, %v1194, 0
  %v1197 = vshrl.u32 %v1196, 5
  %v1198 = vand.u32 %v1196, 31
  %v1199 = vsub.s32 32, %v1198
  %v1200 = vshrl.u32 683565275, %v1199
  %v1201 = vshll.u32 683565275, %v1198
  %v1202 = vshrl.u32 2475754826, %v1199
  %v1203 = vor.u32 %v1201, %v1202
  %v1204 = vshll.u32 2475754826, %v1198
  %v1205 = vshrl.u32 2131351028, %v1199
  %v1206 = vor.u32 %v1204, %v1205
  %v1207 = vshll.u32 2131351028, %v1198
  %v1208 = vshrl.u32 2102212464, %v1199
  %v1209 = vor.u32 %v1207, %v1208
  %v1210 = vshll.u32 2102212464, %v1198
  %v1211 = vshrl.u32 920167782, %v1199
  %v1212 = vor.u32 %v1210, %v1211
  %v1213 = vshll.u32 920167782, %v1198
  %v1214 = vshrl.u32 1326507024, %v1199
  %v1215 = vor.u32 %v1213, %v1214
  %vm1216 = vcmp.lt.s32.totalorder %v1197, 1
  %vm1217 = vcmp.lt.s32.totalorder %v1197, 2
  %vm1218 = vcmp.lt.s32.totalorder %v1197, 3
  %vm1219 = vcmp.lt.s32.totalorder %v1197, 4
  %v1220 = vsel %vm1216, %v1200, %v1203
  %v1221 = vsel %vm1219, %v1209, 2102212464
  %v1222 = vsel %vm1218, %v1206, %v1221
  %v1223 = vsel %vm1217, %v1220, %v1222
  %v1224 = vsel %vm1216, %v1203, %v1206
  %v1225 = vsel %vm1219, %v1212, 920167782
  %v1226 = vsel %vm1218, %v1209, %v1225
  %v1227 = vsel %vm1217, %v1224, %v1226
  %v1228 = vsel %vm1216, %v1206, %v1209
  %v1229 = vsel %vm1219, %v1215, 1326507024
  %v1230 = vsel %vm1218, %v1212, %v1229
  %v1231 = vsel %vm1217, %v1228, %v1230
  %v1232 = vshll.u32 %v1192, 8
  %v1233 = vmul.u32.u64.compose %v1232, %v1231
  %v1234 = vextract.low.u32 %v1233
  %v1235 = vextract.high.u32 %v1233
  %v1236 = vmul.u32.u64.compose %v1232, %v1227
  %v1237 = vextract.low.u32 %v1236
  %v1238 = vextract.high.u32 %v1236
  %v1239 = vmul.u32 %v1232, %v1223
  %v1240 = vadd.s32 %v1235, %v1237
  %vm1241 = vc.u32 %v1235, %v1237
  %v1242 = vadd.s32 %v1238, 1
  %v1243 = vsel %vm1241, %v1242, %v1238
  %v1244 = vadd.s32 %v1239, %v1243
  %v1245 = vadd.s32 %v1244, 536870912
  %v1246 = vshrl.u32 %v1245, 30
  %v1247 = vshll.u32 %v1246, 30
  %v1248 = vsub.s32 %v1244, %v1247
  %vm1249 = vcmp.lt.s32.totalorder %v1248, 0
  %v1250 = vsub.s32 0, %v1248
  %v1251 = vsel %vm1249, %v1250, %v1248
  %v1252 = vclz %v1251
  %v1253 = vsub.s32 %v1252, 2
  %vm1254 = vcmp.gt.s32.totalorder 0, %v1253
  %v1255 = vsel %vm1254, 0, %v1253
  %v1256 = vsub.s32 32, %v1255
  %v1257 = vshll.u32 %v1248, %v1255
  %v1258 = vshrl.u32 %v1240, %v1256
  %v1259 = vor.u32 %v1257, %v1258
  %v1260 = vsub.s32 4294967266, %v1255
  %v1261 = vadd.s32 %v1260, 127
  %v1262 = vshll.u32 %v1261, 23
  %v1263 = vor.u32 4788187, %v1262
  %v1264 = vand.u32 2147483647, %v1263
  %v1266 = vcvt.s32.f32 %v1259
  %v1267 = vmul.f32 %v1266, %v1264
  %v1268 = vxor.u32 %v1267, 2147483648
  %v1269 = vsel %vm1186, %v1268, %v1267
  %v1270 = vsub.s32 4, %v1246
  %v1271 = vsel %vm1186, %v1270, %v1246
  %v1272 = vsel %vm1185, %v35, %v1269
  %v1273 = vsel %vm1185, 0, %v1271
  %v1274 = vcosq.f32.pop %v1272
  %v1275 = vsinq.f32.pop %v1272
  %vm1276 = vweird.f32 %v35
  %v1277 = vadd.s32 %v1273, 3
  %v1278 = vand.u32 %v1277, 3
  %vm1279 = vcmp.lt.s32.totalorder %v1278, 2
  %vm1280 = vcmp.eq.s32.totalorder %v1278, 0
  %v1281 = vxor.u32 %v1275, 2147483648
  %v1282 = vsel %vm1280, %v1274, %v1281
  %vm1283 = vcmp.eq.s32.totalorder %v1278, 2
  %v1284 = vxor.u32 %v1274, 2147483648
  %v1285 = vsel %vm1283, %v1284, %v1275
  %v1286 = vsel %vm1279, %v1282, %v1285
  %v1287 = vsel %vm1276, nan, %v1286
  %v1288 = vand.u32 2147483647, %v36
  %vm1289 = vcmp.le.f32.partialorder %v1288, 0.7853982
  %vm1290 = vcmp.lt.s32.totalorder %v36, 0
  %v1291 = vand.u32 %v36, 2139095040
  %v1292 = vshrl.u32 %v1291, 23
  %v1293 = vsub.s32 %v1292, 127
  %v1294 = vand.u32 2147483647, %v36
  %v1295 = vand.u32 %v1294, 8388607
  %v1296 = vor.u32 %v1295, 8388608
  %v1297 = vsub.s32 0, %v1296
  %v1298 = vadd.s32 %v1293, 1
  %vm1299 = vcmp.gt.s32.totalorder %v1298, 0
  %v1300 = vsel %vm1299, %v1298, 0
  %v1301 = vshrl.u32 %v1300, 5
  %v1302 = vand.u32 %v1300, 31
  %v1303 = vsub.s32 32, %v1302
  %v1304 = vshrl.u32 683565275, %v1303
  %v1305 = vshll.u32 683565275, %v1302
  %v1306 = vshrl.u32 2475754826, %v1303
  %v1307 = vor.u32 %v1305, %v1306
  %v1308 = vshll.u32 2475754826, %v1302
  %v1309 = vshrl.u32 2131351028, %v1303
  %v1310 = vor.u32 %v1308, %v1309
  %v1311 = vshll.u32 2131351028, %v1302
  %v1312 = vshrl.u32 2102212464, %v1303
  %v1313 = vor.u32 %v1311, %v1312
  %v1314 = vshll.u32 2102212464, %v1302
  %v1315 = vshrl.u32 920167782, %v1303
  %v1316 = vor.u32 %v1314, %v1315
  %v1317 = vshll.u32 920167782, %v1302
  %v1318 = vshrl.u32 1326507024, %v1303
  %v1319 = vor.u32 %v1317, %v1318
  %vm1320 = vcmp.lt.s32.totalorder %v1301, 1
  %vm1321 = vcmp.lt.s32.totalorder %v1301, 2
  %vm1322 = vcmp.lt.s32.totalorder %v1301, 3
  %vm1323 = vcmp.lt.s32.totalorder %v1301, 4
  %v1324 = vsel %vm1320, %v1304, %v1307
  %v1325 = vsel %vm1323, %v1313, 2102212464
  %v1326 = vsel %vm1322, %v1310, %v1325
  %v1327 = vsel %vm1321, %v1324, %v1326
  %v1328 = vsel %vm1320, %v1307, %v1310
  %v1329 = vsel %vm1323, %v1316, 920167782
  %v1330 = vsel %vm1322, %v1313, %v1329
  %v1331 = vsel %vm1321, %v1328, %v1330
  %v1332 = vsel %vm1320, %v1310, %v1313
  %v1333 = vsel %vm1323, %v1319, 1326507024
  %v1334 = vsel %vm1322, %v1316, %v1333
  %v1335 = vsel %vm1321, %v1332, %v1334
  %v1336 = vshll.u32 %v1296, 8
  %v1337 = vmul.u32.u64.compose %v1336, %v1335
  %v1338 = vextract.low.u32 %v1337
  %v1339 = vextract.high.u32 %v1337
  %v1340 = vmul.u32.u64.compose %v1336, %v1331
  %v1341 = vextract.low.u32 %v1340
  %v1342 = vextract.high.u32 %v1340
  %v1343 = vmul.u32 %v1336, %v1327
  %v1344 = vadd.s32 %v1339, %v1341
  %vm1345 = vc.u32 %v1339, %v1341
  %v1346 = vadd.s32 %v1342, 1
  %v1347 = vsel %vm1345, %v1346, %v1342
  %v1348 = vadd.s32 %v1343, %v1347
  %v1349 = vadd.s32 %v1348, 536870912
  %v1350 = vshrl.u32 %v1349, 30
  %v1351 = vshll.u32 %v1350, 30
  %v1352 = vsub.s32 %v1348, %v1351
  %vm1353 = vcmp.lt.s32.totalorder %v1352, 0
  %v1354 = vsub.s32 0, %v1352
  %v1355 = vsel %vm1353, %v1354, %v1352
  %v1356 = vclz %v1355
  %v1357 = vsub.s32 %v1356, 2
  %vm1358 = vcmp.gt.s32.totalorder 0, %v1357
  %v1359 = vsel %vm1358, 0, %v1357
  %v1360 = vsub.s32 32, %v1359
  %v1361 = vshll.u32 %v1352, %v1359
  %v1362 = vshrl.u32 %v1344, %v1360
  %v1363 = vor.u32 %v1361, %v1362
  %v1364 = vsub.s32 4294967266, %v1359
  %v1365 = vadd.s32 %v1364, 127
  %v1366 = vshll.u32 %v1365, 23
  %v1367 = vor.u32 4788187, %v1366
  %v1368 = vand.u32 2147483647, %v1367
  %v1370 = vcvt.s32.f32 %v1363
  %v1371 = vmul.f32 %v1370, %v1368
  %v1372 = vxor.u32 %v1371, 2147483648
  %v1373 = vsel %vm1290, %v1372, %v1371
  %v1374 = vsub.s32 4, %v1350
  %v1375 = vsel %vm1290, %v1374, %v1350
  %v1376 = vsel %vm1289, %v36, %v1373
  %v1377 = vsel %vm1289, 0, %v1375
  %v1378 = vcosq.f32.pop %v1376
  %v1379 = vsinq.f32.pop %v1376
  %vm1380 = vweird.f32 %v36
  %v1381 = vadd.s32 %v1377, 3
  %v1382 = vand.u32 %v1381, 3
  %vm1383 = vcmp.lt.s32.totalorder %v1382, 2
  %vm1384 = vcmp.eq.s32.totalorder %v1382, 0
  %v1385 = vxor.u32 %v1379, 2147483648
  %v1386 = vsel %vm1384, %v1378, %v1385
  %vm1387 = vcmp.eq.s32.totalorder %v1382, 2
  %v1388 = vxor.u32 %v1378, 2147483648
  %v1389 = vsel %vm1387, %v1388, %v1379
  %v1390 = vsel %vm1383, %v1386, %v1389
  %v1391 = vsel %vm1380, nan, %v1390
  %v1392 = vand.u32 2147483647, %v37
  %vm1393 = vcmp.le.f32.partialorder %v1392, 0.7853982
  %vm1394 = vcmp.lt.s32.totalorder %v37, 0
  %v1395 = vand.u32 %v37, 2139095040
  %v1396 = vshrl.u32 %v1395, 23
  %v1397 = vsub.s32 %v1396, 127
  %v1398 = vand.u32 2147483647, %v37
  %v1399 = vand.u32 %v1398, 8388607
  %v1400 = vor.u32 %v1399, 8388608
  %v1401 = vsub.s32 0, %v1400
  %v1402 = vadd.s32 %v1397, 1
  %vm1403 = vcmp.gt.s32.totalorder %v1402, 0
  %v1404 = vsel %vm1403, %v1402, 0
  %v1405 = vshrl.u32 %v1404, 5
  %v1406 = vand.u32 %v1404, 31
  %v1407 = vsub.s32 32, %v1406
  %v1408 = vshrl.u32 683565275, %v1407
  %v1409 = vshll.u32 683565275, %v1406
  %v1410 = vshrl.u32 2475754826, %v1407
  %v1411 = vor.u32 %v1409, %v1410
  %v1412 = vshll.u32 2475754826, %v1406
  %v1413 = vshrl.u32 2131351028, %v1407
  %v1414 = vor.u32 %v1412, %v1413
  %v1415 = vshll.u32 2131351028, %v1406
  %v1416 = vshrl.u32 2102212464, %v1407
  %v1417 = vor.u32 %v1415, %v1416
  %v1418 = vshll.u32 2102212464, %v1406
  %v1419 = vshrl.u32 920167782, %v1407
  %v1420 = vor.u32 %v1418, %v1419
  %v1421 = vshll.u32 920167782, %v1406
  %v1422 = vshrl.u32 1326507024, %v1407
  %v1423 = vor.u32 %v1421, %v1422
  %vm1424 = vcmp.lt.s32.totalorder %v1405, 1
  %vm1425 = vcmp.lt.s32.totalorder %v1405, 2
  %vm1426 = vcmp.lt.s32.totalorder %v1405, 3
  %vm1427 = vcmp.lt.s32.totalorder %v1405, 4
  %v1428 = vsel %vm1424, %v1408, %v1411
  %v1429 = vsel %vm1427, %v1417, 2102212464
  %v1430 = vsel %vm1426, %v1414, %v1429
  %v1431 = vsel %vm1425, %v1428, %v1430
  %v1432 = vsel %vm1424, %v1411, %v1414
  %v1433 = vsel %vm1427, %v1420, 920167782
  %v1434 = vsel %vm1426, %v1417, %v1433
  %v1435 = vsel %vm1425, %v1432, %v1434
  %v1436 = vsel %vm1424, %v1414, %v1417
  %v1437 = vsel %vm1427, %v1423, 1326507024
  %v1438 = vsel %vm1426, %v1420, %v1437
  %v1439 = vsel %vm1425, %v1436, %v1438
  %v1440 = vshll.u32 %v1400, 8
  %v1441 = vmul.u32.u64.compose %v1440, %v1439
  %v1442 = vextract.low.u32 %v1441
  %v1443 = vextract.high.u32 %v1441
  %v1444 = vmul.u32.u64.compose %v1440, %v1435
  %v1445 = vextract.low.u32 %v1444
  %v1446 = vextract.high.u32 %v1444
  %v1447 = vmul.u32 %v1440, %v1431
  %v1448 = vadd.s32 %v1443, %v1445
  %vm1449 = vc.u32 %v1443, %v1445
  %v1450 = vadd.s32 %v1446, 1
  %v1451 = vsel %vm1449, %v1450, %v1446
  %v1452 = vadd.s32 %v1447, %v1451
  %v1453 = vadd.s32 %v1452, 536870912
  %v1454 = vshrl.u32 %v1453, 30
  %v1455 = vshll.u32 %v1454, 30
  %v1456 = vsub.s32 %v1452, %v1455
  %vm1457 = vcmp.lt.s32.totalorder %v1456, 0
  %v1458 = vsub.s32 0, %v1456
  %v1459 = vsel %vm1457, %v1458, %v1456
  %v1460 = vclz %v1459
  %v1461 = vsub.s32 %v1460, 2
  %vm1462 = vcmp.gt.s32.totalorder 0, %v1461
  %v1463 = vsel %vm1462, 0, %v1461
  %v1464 = vsub.s32 32, %v1463
  %v1465 = vshll.u32 %v1456, %v1463
  %v1466 = vshrl.u32 %v1448, %v1464
  %v1467 = vor.u32 %v1465, %v1466
  %v1468 = vsub.s32 4294967266, %v1463
  %v1469 = vadd.s32 %v1468, 127
  %v1470 = vshll.u32 %v1469, 23
  %v1471 = vor.u32 4788187, %v1470
  %v1472 = vand.u32 2147483647, %v1471
  %v1474 = vcvt.s32.f32 %v1467
  %v1475 = vmul.f32 %v1474, %v1472
  %v1476 = vxor.u32 %v1475, 2147483648
  %v1477 = vsel %vm1394, %v1476, %v1475
  %v1478 = vsub.s32 4, %v1454
  %v1479 = vsel %vm1394, %v1478, %v1454
  %v1480 = vsel %vm1393, %v37, %v1477
  %v1481 = vsel %vm1393, 0, %v1479
  %v1482 = vcosq.f32.pop %v1480
  %v1483 = vsinq.f32.pop %v1480
  %vm1484 = vweird.f32 %v37
  %v1485 = vadd.s32 %v1481, 3
  %v1486 = vand.u32 %v1485, 3
  %vm1487 = vcmp.lt.s32.totalorder %v1486, 2
  %vm1488 = vcmp.eq.s32.totalorder %v1486, 0
  %v1489 = vxor.u32 %v1483, 2147483648
  %v1490 = vsel %vm1488, %v1482, %v1489
  %vm1491 = vcmp.eq.s32.totalorder %v1486, 2
  %v1492 = vxor.u32 %v1482, 2147483648
  %v1493 = vsel %vm1491, %v1492, %v1483
  %v1494 = vsel %vm1487, %v1490, %v1493
  %v1495 = vsel %vm1484, nan, %v1494
  %v1496 = vand.u32 2147483647, %v38
  %vm1497 = vcmp.le.f32.partialorder %v1496, 0.7853982
  %vm1498 = vcmp.lt.s32.totalorder %v38, 0
  %v1499 = vand.u32 %v38, 2139095040
  %v1500 = vshrl.u32 %v1499, 23
  %v1501 = vsub.s32 %v1500, 127
  %v1502 = vand.u32 2147483647, %v38
  %v1503 = vand.u32 %v1502, 8388607
  %v1504 = vor.u32 %v1503, 8388608
  %v1505 = vsub.s32 0, %v1504
  %v1506 = vadd.s32 %v1501, 1
  %vm1507 = vcmp.gt.s32.totalorder %v1506, 0
  %v1508 = vsel %vm1507, %v1506, 0
  %v1509 = vshrl.u32 %v1508, 5
  %v1510 = vand.u32 %v1508, 31
  %v1511 = vsub.s32 32, %v1510
  %v1512 = vshrl.u32 683565275, %v1511
  %v1513 = vshll.u32 683565275, %v1510
  %v1514 = vshrl.u32 2475754826, %v1511
  %v1515 = vor.u32 %v1513, %v1514
  %v1516 = vshll.u32 2475754826, %v1510
  %v1517 = vshrl.u32 2131351028, %v1511
  %v1518 = vor.u32 %v1516, %v1517
  %v1519 = vshll.u32 2131351028, %v1510
  %v1520 = vshrl.u32 2102212464, %v1511
  %v1521 = vor.u32 %v1519, %v1520
  %v1522 = vshll.u32 2102212464, %v1510
  %v1523 = vshrl.u32 920167782, %v1511
  %v1524 = vor.u32 %v1522, %v1523
  %v1525 = vshll.u32 920167782, %v1510
  %v1526 = vshrl.u32 1326507024, %v1511
  %v1527 = vor.u32 %v1525, %v1526
  %vm1528 = vcmp.lt.s32.totalorder %v1509, 1
  %vm1529 = vcmp.lt.s32.totalorder %v1509, 2
  %vm1530 = vcmp.lt.s32.totalorder %v1509, 3
  %vm1531 = vcmp.lt.s32.totalorder %v1509, 4
  %v1532 = vsel %vm1528, %v1512, %v1515
  %v1533 = vsel %vm1531, %v1521, 2102212464
  %v1534 = vsel %vm1530, %v1518, %v1533
  %v1535 = vsel %vm1529, %v1532, %v1534
  %v1536 = vsel %vm1528, %v1515, %v1518
  %v1537 = vsel %vm1531, %v1524, 920167782
  %v1538 = vsel %vm1530, %v1521, %v1537
  %v1539 = vsel %vm1529, %v1536, %v1538
  %v1540 = vsel %vm1528, %v1518, %v1521
  %v1541 = vsel %vm1531, %v1527, 1326507024
  %v1542 = vsel %vm1530, %v1524, %v1541
  %v1543 = vsel %vm1529, %v1540, %v1542
  %v1544 = vshll.u32 %v1504, 8
  %v1545 = vmul.u32.u64.compose %v1544, %v1543
  %v1546 = vextract.low.u32 %v1545
  %v1547 = vextract.high.u32 %v1545
  %v1548 = vmul.u32.u64.compose %v1544, %v1539
  %v1549 = vextract.low.u32 %v1548
  %v1550 = vextract.high.u32 %v1548
  %v1551 = vmul.u32 %v1544, %v1535
  %v1552 = vadd.s32 %v1547, %v1549
  %vm1553 = vc.u32 %v1547, %v1549
  %v1554 = vadd.s32 %v1550, 1
  %v1555 = vsel %vm1553, %v1554, %v1550
  %v1556 = vadd.s32 %v1551, %v1555
  %v1557 = vadd.s32 %v1556, 536870912
  %v1558 = vshrl.u32 %v1557, 30
  %v1559 = vshll.u32 %v1558, 30
  %v1560 = vsub.s32 %v1556, %v1559
  %vm1561 = vcmp.lt.s32.totalorder %v1560, 0
  %v1562 = vsub.s32 0, %v1560
  %v1563 = vsel %vm1561, %v1562, %v1560
  %v1564 = vclz %v1563
  %v1565 = vsub.s32 %v1564, 2
  %vm1566 = vcmp.gt.s32.totalorder 0, %v1565
  %v1567 = vsel %vm1566, 0, %v1565
  %v1568 = vsub.s32 32, %v1567
  %v1569 = vshll.u32 %v1560, %v1567
  %v1570 = vshrl.u32 %v1552, %v1568
  %v1571 = vor.u32 %v1569, %v1570
  %v1572 = vsub.s32 4294967266, %v1567
  %v1573 = vadd.s32 %v1572, 127
  %v1574 = vshll.u32 %v1573, 23
  %v1575 = vor.u32 4788187, %v1574
  %v1576 = vand.u32 2147483647, %v1575
  %v1578 = vcvt.s32.f32 %v1571
  %v1579 = vmul.f32 %v1578, %v1576
  %v1580 = vxor.u32 %v1579, 2147483648
  %v1581 = vsel %vm1498, %v1580, %v1579
  %v1582 = vsub.s32 4, %v1558
  %v1583 = vsel %vm1498, %v1582, %v1558
  %v1584 = vsel %vm1497, %v38, %v1581
  %v1585 = vsel %vm1497, 0, %v1583
  %v1586 = vcosq.f32.pop %v1584
  %v1587 = vsinq.f32.pop %v1584
  %vm1588 = vweird.f32 %v38
  %v1589 = vadd.s32 %v1585, 3
  %v1590 = vand.u32 %v1589, 3
  %vm1591 = vcmp.lt.s32.totalorder %v1590, 2
  %vm1592 = vcmp.eq.s32.totalorder %v1590, 0
  %v1593 = vxor.u32 %v1587, 2147483648
  %v1594 = vsel %vm1592, %v1586, %v1593
  %vm1595 = vcmp.eq.s32.totalorder %v1590, 2
  %v1596 = vxor.u32 %v1586, 2147483648
  %v1597 = vsel %vm1595, %v1596, %v1587
  %v1598 = vsel %vm1591, %v1594, %v1597
  %v1599 = vsel %vm1588, nan, %v1598
  %v1600 = vand.u32 2147483647, %v39
  %vm1601 = vcmp.le.f32.partialorder %v1600, 0.7853982
  %vm1602 = vcmp.lt.s32.totalorder %v39, 0
  %v1603 = vand.u32 %v39, 2139095040
  %v1604 = vshrl.u32 %v1603, 23
  %v1605 = vsub.s32 %v1604, 127
  %v1606 = vand.u32 2147483647, %v39
  %v1607 = vand.u32 %v1606, 8388607
  %v1608 = vor.u32 %v1607, 8388608
  %v1609 = vsub.s32 0, %v1608
  %v1610 = vadd.s32 %v1605, 1
  %vm1611 = vcmp.gt.s32.totalorder %v1610, 0
  %v1612 = vsel %vm1611, %v1610, 0
  %v1613 = vshrl.u32 %v1612, 5
  %v1614 = vand.u32 %v1612, 31
  %v1615 = vsub.s32 32, %v1614
  %v1616 = vshrl.u32 683565275, %v1615
  %v1617 = vshll.u32 683565275, %v1614
  %v1618 = vshrl.u32 2475754826, %v1615
  %v1619 = vor.u32 %v1617, %v1618
  %v1620 = vshll.u32 2475754826, %v1614
  %v1621 = vshrl.u32 2131351028, %v1615
  %v1622 = vor.u32 %v1620, %v1621
  %v1623 = vshll.u32 2131351028, %v1614
  %v1624 = vshrl.u32 2102212464, %v1615
  %v1625 = vor.u32 %v1623, %v1624
  %v1626 = vshll.u32 2102212464, %v1614
  %v1627 = vshrl.u32 920167782, %v1615
  %v1628 = vor.u32 %v1626, %v1627
  %v1629 = vshll.u32 920167782, %v1614
  %v1630 = vshrl.u32 1326507024, %v1615
  %v1631 = vor.u32 %v1629, %v1630
  %vm1632 = vcmp.lt.s32.totalorder %v1613, 1
  %vm1633 = vcmp.lt.s32.totalorder %v1613, 2
  %vm1634 = vcmp.lt.s32.totalorder %v1613, 3
  %vm1635 = vcmp.lt.s32.totalorder %v1613, 4
  %v1636 = vsel %vm1632, %v1616, %v1619
  %v1637 = vsel %vm1635, %v1625, 2102212464
  %v1638 = vsel %vm1634, %v1622, %v1637
  %v1639 = vsel %vm1633, %v1636, %v1638
  %v1640 = vsel %vm1632, %v1619, %v1622
  %v1641 = vsel %vm1635, %v1628, 920167782
  %v1642 = vsel %vm1634, %v1625, %v1641
  %v1643 = vsel %vm1633, %v1640, %v1642
  %v1644 = vsel %vm1632, %v1622, %v1625
  %v1645 = vsel %vm1635, %v1631, 1326507024
  %v1646 = vsel %vm1634, %v1628, %v1645
  %v1647 = vsel %vm1633, %v1644, %v1646
  %v1648 = vshll.u32 %v1608, 8
  %v1649 = vmul.u32.u64.compose %v1648, %v1647
  %v1650 = vextract.low.u32 %v1649
  %v1651 = vextract.high.u32 %v1649
  %v1652 = vmul.u32.u64.compose %v1648, %v1643
  %v1653 = vextract.low.u32 %v1652
  %v1654 = vextract.high.u32 %v1652
  %v1655 = vmul.u32 %v1648, %v1639
  %v1656 = vadd.s32 %v1651, %v1653
  %vm1657 = vc.u32 %v1651, %v1653
  %v1658 = vadd.s32 %v1654, 1
  %v1659 = vsel %vm1657, %v1658, %v1654
  %v1660 = vadd.s32 %v1655, %v1659
  %v1661 = vadd.s32 %v1660, 536870912
  %v1662 = vshrl.u32 %v1661, 30
  %v1663 = vshll.u32 %v1662, 30
  %v1664 = vsub.s32 %v1660, %v1663
  %vm1665 = vcmp.lt.s32.totalorder %v1664, 0
  %v1666 = vsub.s32 0, %v1664
  %v1667 = vsel %vm1665, %v1666, %v1664
  %v1668 = vclz %v1667
  %v1669 = vsub.s32 %v1668, 2
  %vm1670 = vcmp.gt.s32.totalorder 0, %v1669
  %v1671 = vsel %vm1670, 0, %v1669
  %v1672 = vsub.s32 32, %v1671
  %v1673 = vshll.u32 %v1664, %v1671
  %v1674 = vshrl.u32 %v1656, %v1672
  %v1675 = vor.u32 %v1673, %v1674
  %v1676 = vsub.s32 4294967266, %v1671
  %v1677 = vadd.s32 %v1676, 127
  %v1678 = vshll.u32 %v1677, 23
  %v1679 = vor.u32 4788187, %v1678
  %v1680 = vand.u32 2147483647, %v1679
  %v1682 = vcvt.s32.f32 %v1675
  %v1683 = vmul.f32 %v1682, %v1680
  %v1684 = vxor.u32 %v1683, 2147483648
  %v1685 = vsel %vm1602, %v1684, %v1683
  %v1686 = vsub.s32 4, %v1662
  %v1687 = vsel %vm1602, %v1686, %v1662
  %v1688 = vsel %vm1601, %v39, %v1685
  %v1689 = vsel %vm1601, 0, %v1687
  %v1690 = vcosq.f32.pop %v1688
  %v1691 = vsinq.f32.pop %v1688
  %vm1692 = vweird.f32 %v39
  %v1693 = vadd.s32 %v1689, 3
  %v1694 = vand.u32 %v1693, 3
  %vm1695 = vcmp.lt.s32.totalorder %v1694, 2
  %vm1696 = vcmp.eq.s32.totalorder %v1694, 0
  %v1697 = vxor.u32 %v1691, 2147483648
  %v1698 = vsel %vm1696, %v1690, %v1697
  %vm1699 = vcmp.eq.s32.totalorder %v1694, 2
  %v1700 = vxor.u32 %v1690, 2147483648
  %v1701 = vsel %vm1699, %v1700, %v1691
  %v1702 = vsel %vm1695, %v1698, %v1701
  %v1703 = vsel %vm1692, nan, %v1702
  %vm1704 = vcmask 130048
  %1705 = vst.msk [vmem:[%s1] sm:$0xff] %vm1704, %v143
  %1706 = vst.msk [vmem:[%s1 + $0x8] sm:$0xff] %vm1704, %v247
  %1707 = vst.msk [vmem:[%s1 + $0x10] sm:$0xff] %vm1704, %v351
  %1708 = vst.msk [vmem:[%s1 + $0x18] sm:$0xff] %vm1704, %v455
  %1709 = vst.msk [vmem:[%s1 + $0x20] sm:$0xff] %vm1704, %v559
  %1710 = vst.msk [vmem:[%s1 + $0x28] sm:$0xff] %vm1704, %v663
  %1711 = vst.msk [vmem:[%s1 + $0x30] sm:$0xff] %vm1704, %v767
  %1712 = vst.msk [vmem:[%s1 + $0x38] sm:$0xff] %vm1704, %v871
  %1713 = vst.msk [vmem:[%s1 + $0x40] sm:$0xff] %vm1704, %v975
  %1714 = vst.msk [vmem:[%s1 + $0x48] sm:$0xff] %vm1704, %v1079
  %1715 = vst.msk [vmem:[%s1 + $0x50] sm:$0xff] %vm1704, %v1183
  %1716 = vst.msk [vmem:[%s1 + $0x58] sm:$0xff] %vm1704, %v1287
  %1717 = vst.msk [vmem:[%s1 + $0x60] sm:$0xff] %vm1704, %v1391
  %1718 = vst.msk [vmem:[%s1 + $0x68] sm:$0xff] %vm1704, %v1495
  %1719 = vst.msk [vmem:[%s1 + $0x70] sm:$0xff] %vm1704, %v1599
  %1720 = vst.msk [vmem:[%s1 + $0x78] sm:$0xff] %vm1704, %v1703
  // Predicated region
  $region6: #{tpu_custom_call.1} parent=0 // pred_check
    _
  $region7: #{tpu_custom_call.1} parent=0 // pred_check_branch
    %1722 = sbr.rel (0) target = $region9
  $region8: #{tpu_custom_call.1} parent=0 // pred_region
    _
  $region9: #{tpu_custom_call.1} parent=0 // pred_fallthru
    _
  // Predicated region
  $region10: #{tpu_custom_call.1} parent=0 // pred_check
    _
  $region11: #{tpu_custom_call.1} parent=0 // pred_check_branch
    %1724 = sbr.rel (0) target = $region13
  $region12: #{tpu_custom_call.1} parent=0 // pred_region
    _
  $region13: #{tpu_custom_call.1} parent=0 // pred_fallthru
    _

</llo_original>
